<compile_context>
chip_gen: v7x
topology: tpu7x:2x2x1
jax: 0.10.0
libtpu: 0.0.40
codegen_flags: <defaults>
</compile_context>

<pallas_src>
import jax
import jax.numpy as jnp
from jax.experimental import pallas as pl
from jax.experimental.pallas import tpu as pltpu


def lstm_kernel(x_ref, wih_ref, whh_ref, b_ref, wlin_ref, blin_ref,
                out_ref, xproj_ref):
    T = x_ref.shape[0]
    B = x_ref.shape[1]
    H = whh_ref.shape[0]

    # --- Off-critical-path precompute: input projection + bias for all T ---
    # (T, B, 1) * (1, 4H) + (1, 4H) -> (T, B, 4H), done once before the loop.
    xproj_ref[...] = x_ref[...] * wih_ref[...] + b_ref[...]

    def step(t, carry):
        h, c = carry
        # Single recurrent MXU matmul per step: bf16 operands, f32 accumulate.
        gates = xproj_ref[t] + jnp.dot(
            h.astype(jnp.bfloat16), whh_ref[...],
            preferred_element_type=jnp.float32)
        # PyTorch gate order [i, f, g, o]; 128-aligned lane slices; gate math
        # stays f32 throughout (v5e-safe).
        i = jax.nn.sigmoid(gates[:, 0 * H:1 * H])
        f = jax.nn.sigmoid(gates[:, 1 * H:2 * H])
        g = jnp.tanh(gates[:, 2 * H:3 * H])
        o = jax.nn.sigmoid(gates[:, 3 * H:4 * H])
        c_new = f * c + i * g
        h_new = o * jnp.tanh(c_new)
        return h_new, c_new

    h0 = jnp.zeros((B, H), jnp.float32)
    c0 = jnp.zeros((B, H), jnp.float32)
    h_T, _ = jax.lax.fori_loop(0, T, step, (h0, c0), unroll=True)

    # Linear head: VPU multiply + lane reduction (avoids an N=1 MXU pass).
    y = jnp.sum(h_T * wlin_ref[...], axis=-1, keepdims=True) + blin_ref[...]
    out_ref[...] = y.astype(out_ref.dtype)


def lstm_forward(x, w_ih, w_hh, b_ih, b_hh, w_lin, b_lin):
    """x: (T, B, 1) f32.  Weights follow PyTorch shapes:
       w_ih (4H, 1), w_hh (4H, H), b_ih (4H,), b_hh (4H,),
       w_lin (1, H), b_lin (1,).  Returns (B, 1)."""
    T, B, _ = x.shape
    H = w_hh.shape[1]

    wih_row = jnp.transpose(w_ih)                       # (1, 4H)  f32
    whh_t = jnp.transpose(w_hh).astype(jnp.bfloat16)    # (H, 4H)  bf16 MXU RHS
    b = (b_ih + b_hh).reshape(1, 4 * H)                 # (1, 4H)  f32
    wlin = w_lin.reshape(1, H)                          # (1, H)
    blin = b_lin.reshape(1, 1)                          # (1, 1)

    vmem_spec = pl.BlockSpec(memory_space=pltpu.MemorySpace.VMEM)
    return pl.pallas_call(
        lstm_kernel,
        out_shape=jax.ShapeDtypeStruct((B, 1), jnp.float32),
        in_specs=[vmem_spec] * 6,
        out_specs=vmem_spec,
        scratch_shapes=[pltpu.VMEM((T, B, 4 * H), jnp.float32)],  # xproj
    )(x, wih_row, whh_t, b, wlin, blin)


def lstm_reference(x, w_ih, w_hh, b_ih, b_hh, w_lin, b_lin):
    """Pure-JAX f32 reference implementing PyTorch nn.LSTM + Linear semantics."""
    T, B, _ = x.shape
    H = w_hh.shape[1]
    h = jnp.zeros((B, H), jnp.float32)
    c = jnp.zeros((B, H), jnp.float32)

    def step(carry, x_t):
        h, c = carry
        gates = x_t @ w_ih.T + h @ w_hh.T + b_ih + b_hh
        i = jax.nn.sigmoid(gates[:, 0 * H:1 * H])
        f = jax.nn.sigmoid(gates[:, 1 * H:2 * H])
        g = jnp.tanh(gates[:, 2 * H:3 * H])
        o = jax.nn.sigmoid(gates[:, 3 * H:4 * H])
        c = f * c + i * g
        h = o * jnp.tanh(c)
        return (h, c), None

    (h, c), _ = jax.lax.scan(step, (h, c), x)
    return h @ w_lin.T + b_lin


if __name__ == "__main__":
    T, B, H = 8, 8, 128   # seq_len, batch, hidden_size (input_size = 1)

    key = jax.random.PRNGKey(0)
    ks = jax.random.split(key, 7)
    bound = 1.0 / jnp.sqrt(H)
    # Deterministic synthetic parameters (PyTorch nn.LSTM / nn.Linear shapes).
    w_ih = jax.random.uniform(ks[0], (4 * H, 1), jnp.float32, -bound, bound)
    w_hh = jax.random.uniform(ks[1], (4 * H, H), jnp.float32, -bound, bound)
    b_ih = jax.random.uniform(ks[2], (4 * H,), jnp.float32, -bound, bound)
    b_hh = jax.random.uniform(ks[3], (4 * H,), jnp.float32, -bound, bound)
    w_lin = jax.random.uniform(ks[4], (1, H), jnp.float32, -bound, bound)
    b_lin = jax.random.uniform(ks[5], (1,), jnp.float32, -bound, bound)

    x = jax.random.normal(ks[6], (T, B, 1), jnp.float32)

    out = lstm_forward(x, w_ih, w_hh, b_ih, b_hh, w_lin, b_lin)
    out = jax.block_until_ready(out)

    ref = lstm_reference(x, w_ih, w_hh, b_ih, b_hh, w_lin, b_lin)
    assert out.shape == (B, 1)
    # bf16 MXU operands (f32 accumulate) on the recurrent matmul: validate at
    # 1e-3 against the full-f32 reference.
    assert jnp.allclose(out, ref, atol=1e-3, rtol=1e-3), (out, ref)

    print("KERNEL_OK")
</pallas_src>

<mosaic_0001>
module attributes {stable_mosaic.version = 11 : i64} {
  func.func @lstm_kernel(%arg0: memref<8x8x1xf32, #tpu.memory_space<vmem>>, %arg1: memref<1x512xf32, #tpu.memory_space<vmem>>, %arg2: memref<128x512xbf16, #tpu.memory_space<vmem>>, %arg3: memref<1x512xf32, #tpu.memory_space<vmem>>, %arg4: memref<1x128xf32, #tpu.memory_space<vmem>>, %arg5: memref<1x1xf32, #tpu.memory_space<vmem>>, %arg6: memref<8x1xf32, #tpu.memory_space<vmem>>, %arg7: memref<8x8x512xf32, #tpu.memory_space<vmem>>) attributes {dimension_semantics = [], scalar_prefetch = 0 : i64, scratch_operands = 1 : i64, tpu.core_type = #tpu.core_type<tc>} {
    %c0 = arith.constant 0 : index
    %c0_0 = arith.constant 0 : index
    %c0_1 = arith.constant 0 : index
    %0 = vector.load %arg0[%c0, %c0_0, %c0_1] : memref<8x8x1xf32, #tpu.memory_space<vmem>>, vector<8x8x1xf32>
    %c0_2 = arith.constant 0 : index
    %c0_3 = arith.constant 0 : index
    %1 = vector.load %arg1[%c0_2, %c0_3] : memref<1x512xf32, #tpu.memory_space<vmem>>, vector<1x512xf32>
    %2 = vector.shape_cast %1 : vector<1x512xf32> to vector<1x1x512xf32>
    %3 = vector.broadcast %0 : vector<8x8x1xf32> to vector<8x8x512xf32>
    %4 = vector.broadcast %2 : vector<1x1x512xf32> to vector<8x8x512xf32>
    %5 = arith.mulf %3, %4 : vector<8x8x512xf32>
    %c0_4 = arith.constant 0 : index
    %c0_5 = arith.constant 0 : index
    %6 = vector.load %arg3[%c0_4, %c0_5] : memref<1x512xf32, #tpu.memory_space<vmem>>, vector<1x512xf32>
    %7 = vector.shape_cast %6 : vector<1x512xf32> to vector<1x1x512xf32>
    %8 = vector.broadcast %7 : vector<1x1x512xf32> to vector<8x8x512xf32>
    %9 = arith.addf %5, %8 : vector<8x8x512xf32>
    %c0_6 = arith.constant 0 : index
    %c0_7 = arith.constant 0 : index
    %c0_8 = arith.constant 0 : index
    %10 = vector.load %arg7[%c0_6, %c0_7, %c0_8] : memref<8x8x512xf32, #tpu.memory_space<vmem>>, vector<8x8x512xf32>
    tpu.vector_store %arg7[%c0_6, %c0_7, %c0_8], %9 {strides = array<i32>} : memref<8x8x512xf32, #tpu.memory_space<vmem>>, vector<8x8x512xf32>,
    %cst = arith.constant 0.000000e+00 : f32
    %11 = vector.broadcast %cst : f32 to vector<8x128xf32>
    %cst_9 = arith.constant 0.000000e+00 : f32
    %12 = vector.broadcast %cst_9 : f32 to vector<8x128xf32>
    %c0_i32 = arith.constant 0 : i32
    %13 = arith.index_cast %c0_i32 : i32 to index
    %c0_10 = arith.constant 0 : index
    %c0_11 = arith.constant 0 : index
    %14 = vector.load %arg7[%13, %c0_10, %c0_11] : memref<8x8x512xf32, #tpu.memory_space<vmem>>, vector<1x8x512xf32>
    %15 = vector.shape_cast %14 : vector<1x8x512xf32> to vector<8x512xf32>
    %16 = arith.truncf %11 : vector<8x128xf32> to vector<8x128xbf16>
    %c0_12 = arith.constant 0 : index
    %c0_13 = arith.constant 0 : index
    %17 = vector.load %arg2[%c0_12, %c0_13] : memref<128x512xbf16, #tpu.memory_space<vmem>>, vector<128x512xbf16>
    %cst_14 = arith.constant dense<0.000000e+00> : vector<8x512xf32>
    %18 = tpu.matmul %16, %17, %cst_14 {dimension_numbers = #tpu.dot_dimension_numbers<[1], [0], [0], [1], [0, 0, 1, 1], [], []>} : vector<8x128xbf16>, vector<128x512xbf16>, vector<8x512xf32> -> vector<8x512xf32>
    %19 = arith.addf %15, %18 : vector<8x512xf32>
    %20 = vector.extract_strided_slice %19 {offsets = [0, 0], sizes = [8, 128], strides = [1, 1]} : vector<8x512xf32> to vector<8x128xf32>
    %21 = arith.negf %20 : vector<8x128xf32>
    %22 = math.exp %21 : vector<8x128xf32>
    %cst_15 = arith.constant 1.000000e+00 : f32
    %23 = vector.broadcast %cst_15 : f32 to vector<8x128xf32>
    %24 = arith.addf %23, %22 : vector<8x128xf32>
    %25 = arith.divf %23, %24 : vector<8x128xf32>
    %26 = vector.extract_strided_slice %19 {offsets = [0, 128], sizes = [8, 128], strides = [1, 1]} : vector<8x512xf32> to vector<8x128xf32>
    %27 = arith.negf %26 : vector<8x128xf32>
    %28 = math.exp %27 : vector<8x128xf32>
    %cst_16 = arith.constant 1.000000e+00 : f32
    %29 = vector.broadcast %cst_16 : f32 to vector<8x128xf32>
    %30 = arith.addf %29, %28 : vector<8x128xf32>
    %31 = arith.divf %29, %30 : vector<8x128xf32>
    %32 = vector.extract_strided_slice %19 {offsets = [0, 256], sizes = [8, 128], strides = [1, 1]} : vector<8x512xf32> to vector<8x128xf32>
    %33 = math.tanh %32 : vector<8x128xf32>
    %34 = vector.extract_strided_slice %19 {offsets = [0, 384], sizes = [8, 128], strides = [1, 1]} : vector<8x512xf32> to vector<8x128xf32>
    %35 = arith.negf %34 : vector<8x128xf32>
    %36 = math.exp %35 : vector<8x128xf32>
    %cst_17 = arith.constant 1.000000e+00 : f32
    %37 = vector.broadcast %cst_17 : f32 to vector<8x128xf32>
    %38 = arith.addf %37, %36 : vector<8x128xf32>
    %39 = arith.divf %37, %38 : vector<8x128xf32>
    %40 = arith.mulf %31, %12 : vector<8x128xf32>
    %41 = arith.mulf %25, %33 : vector<8x128xf32>
    %42 = arith.addf %40, %41 : vector<8x128xf32>
    %43 = math.tanh %42 : vector<8x128xf32>
    %44 = arith.mulf %39, %43 : vector<8x128xf32>
    %c1_i32 = arith.constant 1 : i32
    %45 = arith.index_cast %c1_i32 : i32 to index
    %c0_18 = arith.constant 0 : index
    %c0_19 = arith.constant 0 : index
    %46 = vector.load %arg7[%45, %c0_18, %c0_19] : memref<8x8x512xf32, #tpu.memory_space<vmem>>, vector<1x8x512xf32>
    %47 = vector.shape_cast %46 : vector<1x8x512xf32> to vector<8x512xf32>
    %48 = arith.truncf %44 : vector<8x128xf32> to vector<8x128xbf16>
    %c0_20 = arith.constant 0 : index
    %c0_21 = arith.constant 0 : index
    %49 = vector.load %arg2[%c0_20, %c0_21] : memref<128x512xbf16, #tpu.memory_space<vmem>>, vector<128x512xbf16>
    %cst_22 = arith.constant dense<0.000000e+00> : vector<8x512xf32>
    %50 = tpu.matmul %48, %49, %cst_22 {dimension_numbers = #tpu.dot_dimension_numbers<[1], [0], [0], [1], [0, 0, 1, 1], [], []>} : vector<8x128xbf16>, vector<128x512xbf16>, vector<8x512xf32> -> vector<8x512xf32>
    %51 = arith.addf %47, %50 : vector<8x512xf32>
    %52 = vector.extract_strided_slice %51 {offsets = [0, 0], sizes = [8, 128], strides = [1, 1]} : vector<8x512xf32> to vector<8x128xf32>
    %53 = arith.negf %52 : vector<8x128xf32>
    %54 = math.exp %53 : vector<8x128xf32>
    %cst_23 = arith.constant 1.000000e+00 : f32
    %55 = vector.broadcast %cst_23 : f32 to vector<8x128xf32>
    %56 = arith.addf %55, %54 : vector<8x128xf32>
    %57 = arith.divf %55, %56 : vector<8x128xf32>
    %58 = vector.extract_strided_slice %51 {offsets = [0, 128], sizes = [8, 128], strides = [1, 1]} : vector<8x512xf32> to vector<8x128xf32>
    %59 = arith.negf %58 : vector<8x128xf32>
    %60 = math.exp %59 : vector<8x128xf32>
    %cst_24 = arith.constant 1.000000e+00 : f32
    %61 = vector.broadcast %cst_24 : f32 to vector<8x128xf32>
    %62 = arith.addf %61, %60 : vector<8x128xf32>
    %63 = arith.divf %61, %62 : vector<8x128xf32>
    %64 = vector.extract_strided_slice %51 {offsets = [0, 256], sizes = [8, 128], strides = [1, 1]} : vector<8x512xf32> to vector<8x128xf32>
    %65 = math.tanh %64 : vector<8x128xf32>
    %66 = vector.extract_strided_slice %51 {offsets = [0, 384], sizes = [8, 128], strides = [1, 1]} : vector<8x512xf32> to vector<8x128xf32>
    %67 = arith.negf %66 : vector<8x128xf32>
    %68 = math.exp %67 : vector<8x128xf32>
    %cst_25 = arith.constant 1.000000e+00 : f32
    %69 = vector.broadcast %cst_25 : f32 to vector<8x128xf32>
    %70 = arith.addf %69, %68 : vector<8x128xf32>
    %71 = arith.divf %69, %70 : vector<8x128xf32>
    %72 = arith.mulf %63, %42 : vector<8x128xf32>
    %73 = arith.mulf %57, %65 : vector<8x128xf32>
    %74 = arith.addf %72, %73 : vector<8x128xf32>
    %75 = math.tanh %74 : vector<8x128xf32>
    %76 = arith.mulf %71, %75 : vector<8x128xf32>
    %c2_i32 = arith.constant 2 : i32
    %77 = arith.index_cast %c2_i32 : i32 to index
    %c0_26 = arith.constant 0 : index
    %c0_27 = arith.constant 0 : index
    %78 = vector.load %arg7[%77, %c0_26, %c0_27] : memref<8x8x512xf32, #tpu.memory_space<vmem>>, vector<1x8x512xf32>
    %79 = vector.shape_cast %78 : vector<1x8x512xf32> to vector<8x512xf32>
    %80 = arith.truncf %76 : vector<8x128xf32> to vector<8x128xbf16>
    %c0_28 = arith.constant 0 : index
    %c0_29 = arith.constant 0 : index
    %81 = vector.load %arg2[%c0_28, %c0_29] : memref<128x512xbf16, #tpu.memory_space<vmem>>, vector<128x512xbf16>
    %cst_30 = arith.constant dense<0.000000e+00> : vector<8x512xf32>
    %82 = tpu.matmul %80, %81, %cst_30 {dimension_numbers = #tpu.dot_dimension_numbers<[1], [0], [0], [1], [0, 0, 1, 1], [], []>} : vector<8x128xbf16>, vector<128x512xbf16>, vector<8x512xf32> -> vector<8x512xf32>
    %83 = arith.addf %79, %82 : vector<8x512xf32>
    %84 = vector.extract_strided_slice %83 {offsets = [0, 0], sizes = [8, 128], strides = [1, 1]} : vector<8x512xf32> to vector<8x128xf32>
    %85 = arith.negf %84 : vector<8x128xf32>
    %86 = math.exp %85 : vector<8x128xf32>
    %cst_31 = arith.constant 1.000000e+00 : f32
    %87 = vector.broadcast %cst_31 : f32 to vector<8x128xf32>
    %88 = arith.addf %87, %86 : vector<8x128xf32>
    %89 = arith.divf %87, %88 : vector<8x128xf32>
    %90 = vector.extract_strided_slice %83 {offsets = [0, 128], sizes = [8, 128], strides = [1, 1]} : vector<8x512xf32> to vector<8x128xf32>
    %91 = arith.negf %90 : vector<8x128xf32>
    %92 = math.exp %91 : vector<8x128xf32>
    %cst_32 = arith.constant 1.000000e+00 : f32
    %93 = vector.broadcast %cst_32 : f32 to vector<8x128xf32>
    %94 = arith.addf %93, %92 : vector<8x128xf32>
    %95 = arith.divf %93, %94 : vector<8x128xf32>
    %96 = vector.extract_strided_slice %83 {offsets = [0, 256], sizes = [8, 128], strides = [1, 1]} : vector<8x512xf32> to vector<8x128xf32>
    %97 = math.tanh %96 : vector<8x128xf32>
    %98 = vector.extract_strided_slice %83 {offsets = [0, 384], sizes = [8, 128], strides = [1, 1]} : vector<8x512xf32> to vector<8x128xf32>
    %99 = arith.negf %98 : vector<8x128xf32>
    %100 = math.exp %99 : vector<8x128xf32>
    %cst_33 = arith.constant 1.000000e+00 : f32
    %101 = vector.broadcast %cst_33 : f32 to vector<8x128xf32>
    %102 = arith.addf %101, %100 : vector<8x128xf32>
    %103 = arith.divf %101, %102 : vector<8x128xf32>
    %104 = arith.mulf %95, %74 : vector<8x128xf32>
    %105 = arith.mulf %89, %97 : vector<8x128xf32>
    %106 = arith.addf %104, %105 : vector<8x128xf32>
    %107 = math.tanh %106 : vector<8x128xf32>
    %108 = arith.mulf %103, %107 : vector<8x128xf32>
    %c3_i32 = arith.constant 3 : i32
    %109 = arith.index_cast %c3_i32 : i32 to index
    %c0_34 = arith.constant 0 : index
    %c0_35 = arith.constant 0 : index
    %110 = vector.load %arg7[%109, %c0_34, %c0_35] : memref<8x8x512xf32, #tpu.memory_space<vmem>>, vector<1x8x512xf32>
    %111 = vector.shape_cast %110 : vector<1x8x512xf32> to vector<8x512xf32>
    %112 = arith.truncf %108 : vector<8x128xf32> to vector<8x128xbf16>
    %c0_36 = arith.constant 0 : index
    %c0_37 = arith.constant 0 : index
    %113 = vector.load %arg2[%c0_36, %c0_37] : memref<128x512xbf16, #tpu.memory_space<vmem>>, vector<128x512xbf16>
    %cst_38 = arith.constant dense<0.000000e+00> : vector<8x512xf32>
    %114 = tpu.matmul %112, %113, %cst_38 {dimension_numbers = #tpu.dot_dimension_numbers<[1], [0], [0], [1], [0, 0, 1, 1], [], []>} : vector<8x128xbf16>, vector<128x512xbf16>, vector<8x512xf32> -> vector<8x512xf32>
    %115 = arith.addf %111, %114 : vector<8x512xf32>
    %116 = vector.extract_strided_slice %115 {offsets = [0, 0], sizes = [8, 128], strides = [1, 1]} : vector<8x512xf32> to vector<8x128xf32>
    %117 = arith.negf %116 : vector<8x128xf32>
    %118 = math.exp %117 : vector<8x128xf32>
    %cst_39 = arith.constant 1.000000e+00 : f32
    %119 = vector.broadcast %cst_39 : f32 to vector<8x128xf32>
    %120 = arith.addf %119, %118 : vector<8x128xf32>
    %121 = arith.divf %119, %120 : vector<8x128xf32>
    %122 = vector.extract_strided_slice %115 {offsets = [0, 128], sizes = [8, 128], strides = [1, 1]} : vector<8x512xf32> to vector<8x128xf32>
    %123 = arith.negf %122 : vector<8x128xf32>
    %124 = math.exp %123 : vector<8x128xf32>
    %cst_40 = arith.constant 1.000000e+00 : f32
    %125 = vector.broadcast %cst_40 : f32 to vector<8x128xf32>
    %126 = arith.addf %125, %124 : vector<8x128xf32>
    %127 = arith.divf %125, %126 : vector<8x128xf32>
    %128 = vector.extract_strided_slice %115 {offsets = [0, 256], sizes = [8, 128], strides = [1, 1]} : vector<8x512xf32> to vector<8x128xf32>
    %129 = math.tanh %128 : vector<8x128xf32>
    %130 = vector.extract_strided_slice %115 {offsets = [0, 384], sizes = [8, 128], strides = [1, 1]} : vector<8x512xf32> to vector<8x128xf32>
    %131 = arith.negf %130 : vector<8x128xf32>
    %132 = math.exp %131 : vector<8x128xf32>
    %cst_41 = arith.constant 1.000000e+00 : f32
    %133 = vector.broadcast %cst_41 : f32 to vector<8x128xf32>
    %134 = arith.addf %133, %132 : vector<8x128xf32>
    %135 = arith.divf %133, %134 : vector<8x128xf32>
    %136 = arith.mulf %127, %106 : vector<8x128xf32>
    %137 = arith.mulf %121, %129 : vector<8x128xf32>
    %138 = arith.addf %136, %137 : vector<8x128xf32>
    %139 = math.tanh %138 : vector<8x128xf32>
    %140 = arith.mulf %135, %139 : vector<8x128xf32>
    %c4_i32 = arith.constant 4 : i32
    %141 = arith.index_cast %c4_i32 : i32 to index
    %c0_42 = arith.constant 0 : index
    %c0_43 = arith.constant 0 : index
    %142 = vector.load %arg7[%141, %c0_42, %c0_43] : memref<8x8x512xf32, #tpu.memory_space<vmem>>, vector<1x8x512xf32>
    %143 = vector.shape_cast %142 : vector<1x8x512xf32> to vector<8x512xf32>
    %144 = arith.truncf %140 : vector<8x128xf32> to vector<8x128xbf16>
    %c0_44 = arith.constant 0 : index
    %c0_45 = arith.constant 0 : index
    %145 = vector.load %arg2[%c0_44, %c0_45] : memref<128x512xbf16, #tpu.memory_space<vmem>>, vector<128x512xbf16>
    %cst_46 = arith.constant dense<0.000000e+00> : vector<8x512xf32>
    %146 = tpu.matmul %144, %145, %cst_46 {dimension_numbers = #tpu.dot_dimension_numbers<[1], [0], [0], [1], [0, 0, 1, 1], [], []>} : vector<8x128xbf16>, vector<128x512xbf16>, vector<8x512xf32> -> vector<8x512xf32>
    %147 = arith.addf %143, %146 : vector<8x512xf32>
    %148 = vector.extract_strided_slice %147 {offsets = [0, 0], sizes = [8, 128], strides = [1, 1]} : vector<8x512xf32> to vector<8x128xf32>
    %149 = arith.negf %148 : vector<8x128xf32>
    %150 = math.exp %149 : vector<8x128xf32>
    %cst_47 = arith.constant 1.000000e+00 : f32
    %151 = vector.broadcast %cst_47 : f32 to vector<8x128xf32>
    %152 = arith.addf %151, %150 : vector<8x128xf32>
    %153 = arith.divf %151, %152 : vector<8x128xf32>
    %154 = vector.extract_strided_slice %147 {offsets = [0, 128], sizes = [8, 128], strides = [1, 1]} : vector<8x512xf32> to vector<8x128xf32>
    %155 = arith.negf %154 : vector<8x128xf32>
    %156 = math.exp %155 : vector<8x128xf32>
    %cst_48 = arith.constant 1.000000e+00 : f32
    %157 = vector.broadcast %cst_48 : f32 to vector<8x128xf32>
    %158 = arith.addf %157, %156 : vector<8x128xf32>
    %159 = arith.divf %157, %158 : vector<8x128xf32>
    %160 = vector.extract_strided_slice %147 {offsets = [0, 256], sizes = [8, 128], strides = [1, 1]} : vector<8x512xf32> to vector<8x128xf32>
    %161 = math.tanh %160 : vector<8x128xf32>
    %162 = vector.extract_strided_slice %147 {offsets = [0, 384], sizes = [8, 128], strides = [1, 1]} : vector<8x512xf32> to vector<8x128xf32>
    %163 = arith.negf %162 : vector<8x128xf32>
    %164 = math.exp %163 : vector<8x128xf32>
    %cst_49 = arith.constant 1.000000e+00 : f32
    %165 = vector.broadcast %cst_49 : f32 to vector<8x128xf32>
    %166 = arith.addf %165, %164 : vector<8x128xf32>
    %167 = arith.divf %165, %166 : vector<8x128xf32>
    %168 = arith.mulf %159, %138 : vector<8x128xf32>
    %169 = arith.mulf %153, %161 : vector<8x128xf32>
    %170 = arith.addf %168, %169 : vector<8x128xf32>
    %171 = math.tanh %170 : vector<8x128xf32>
    %172 = arith.mulf %167, %171 : vector<8x128xf32>
    %c5_i32 = arith.constant 5 : i32
    %173 = arith.index_cast %c5_i32 : i32 to index
    %c0_50 = arith.constant 0 : index
    %c0_51 = arith.constant 0 : index
    %174 = vector.load %arg7[%173, %c0_50, %c0_51] : memref<8x8x512xf32, #tpu.memory_space<vmem>>, vector<1x8x512xf32>
    %175 = vector.shape_cast %174 : vector<1x8x512xf32> to vector<8x512xf32>
    %176 = arith.truncf %172 : vector<8x128xf32> to vector<8x128xbf16>
    %c0_52 = arith.constant 0 : index
    %c0_53 = arith.constant 0 : index
    %177 = vector.load %arg2[%c0_52, %c0_53] : memref<128x512xbf16, #tpu.memory_space<vmem>>, vector<128x512xbf16>
    %cst_54 = arith.constant dense<0.000000e+00> : vector<8x512xf32>
    %178 = tpu.matmul %176, %177, %cst_54 {dimension_numbers = #tpu.dot_dimension_numbers<[1], [0], [0], [1], [0, 0, 1, 1], [], []>} : vector<8x128xbf16>, vector<128x512xbf16>, vector<8x512xf32> -> vector<8x512xf32>
    %179 = arith.addf %175, %178 : vector<8x512xf32>
    %180 = vector.extract_strided_slice %179 {offsets = [0, 0], sizes = [8, 128], strides = [1, 1]} : vector<8x512xf32> to vector<8x128xf32>
    %181 = arith.negf %180 : vector<8x128xf32>
    %182 = math.exp %181 : vector<8x128xf32>
    %cst_55 = arith.constant 1.000000e+00 : f32
    %183 = vector.broadcast %cst_55 : f32 to vector<8x128xf32>
    %184 = arith.addf %183, %182 : vector<8x128xf32>
    %185 = arith.divf %183, %184 : vector<8x128xf32>
    %186 = vector.extract_strided_slice %179 {offsets = [0, 128], sizes = [8, 128], strides = [1, 1]} : vector<8x512xf32> to vector<8x128xf32>
    %187 = arith.negf %186 : vector<8x128xf32>
    %188 = math.exp %187 : vector<8x128xf32>
    %cst_56 = arith.constant 1.000000e+00 : f32
    %189 = vector.broadcast %cst_56 : f32 to vector<8x128xf32>
    %190 = arith.addf %189, %188 : vector<8x128xf32>
    %191 = arith.divf %189, %190 : vector<8x128xf32>
    %192 = vector.extract_strided_slice %179 {offsets = [0, 256], sizes = [8, 128], strides = [1, 1]} : vector<8x512xf32> to vector<8x128xf32>
    %193 = math.tanh %192 : vector<8x128xf32>
    %194 = vector.extract_strided_slice %179 {offsets = [0, 384], sizes = [8, 128], strides = [1, 1]} : vector<8x512xf32> to vector<8x128xf32>
    %195 = arith.negf %194 : vector<8x128xf32>
    %196 = math.exp %195 : vector<8x128xf32>
    %cst_57 = arith.constant 1.000000e+00 : f32
    %197 = vector.broadcast %cst_57 : f32 to vector<8x128xf32>
    %198 = arith.addf %197, %196 : vector<8x128xf32>
    %199 = arith.divf %197, %198 : vector<8x128xf32>
    %200 = arith.mulf %191, %170 : vector<8x128xf32>
    %201 = arith.mulf %185, %193 : vector<8x128xf32>
    %202 = arith.addf %200, %201 : vector<8x128xf32>
    %203 = math.tanh %202 : vector<8x128xf32>
    %204 = arith.mulf %199, %203 : vector<8x128xf32>
    %c6_i32 = arith.constant 6 : i32
    %205 = arith.index_cast %c6_i32 : i32 to index
    %c0_58 = arith.constant 0 : index
    %c0_59 = arith.constant 0 : index
    %206 = vector.load %arg7[%205, %c0_58, %c0_59] : memref<8x8x512xf32, #tpu.memory_space<vmem>>, vector<1x8x512xf32>
    %207 = vector.shape_cast %206 : vector<1x8x512xf32> to vector<8x512xf32>
    %208 = arith.truncf %204 : vector<8x128xf32> to vector<8x128xbf16>
    %c0_60 = arith.constant 0 : index
    %c0_61 = arith.constant 0 : index
    %209 = vector.load %arg2[%c0_60, %c0_61] : memref<128x512xbf16, #tpu.memory_space<vmem>>, vector<128x512xbf16>
    %cst_62 = arith.constant dense<0.000000e+00> : vector<8x512xf32>
    %210 = tpu.matmul %208, %209, %cst_62 {dimension_numbers = #tpu.dot_dimension_numbers<[1], [0], [0], [1], [0, 0, 1, 1], [], []>} : vector<8x128xbf16>, vector<128x512xbf16>, vector<8x512xf32> -> vector<8x512xf32>
    %211 = arith.addf %207, %210 : vector<8x512xf32>
    %212 = vector.extract_strided_slice %211 {offsets = [0, 0], sizes = [8, 128], strides = [1, 1]} : vector<8x512xf32> to vector<8x128xf32>
    %213 = arith.negf %212 : vector<8x128xf32>
    %214 = math.exp %213 : vector<8x128xf32>
    %cst_63 = arith.constant 1.000000e+00 : f32
    %215 = vector.broadcast %cst_63 : f32 to vector<8x128xf32>
    %216 = arith.addf %215, %214 : vector<8x128xf32>
    %217 = arith.divf %215, %216 : vector<8x128xf32>
    %218 = vector.extract_strided_slice %211 {offsets = [0, 128], sizes = [8, 128], strides = [1, 1]} : vector<8x512xf32> to vector<8x128xf32>
    %219 = arith.negf %218 : vector<8x128xf32>
    %220 = math.exp %219 : vector<8x128xf32>
    %cst_64 = arith.constant 1.000000e+00 : f32
    %221 = vector.broadcast %cst_64 : f32 to vector<8x128xf32>
    %222 = arith.addf %221, %220 : vector<8x128xf32>
    %223 = arith.divf %221, %222 : vector<8x128xf32>
    %224 = vector.extract_strided_slice %211 {offsets = [0, 256], sizes = [8, 128], strides = [1, 1]} : vector<8x512xf32> to vector<8x128xf32>
    %225 = math.tanh %224 : vector<8x128xf32>
    %226 = vector.extract_strided_slice %211 {offsets = [0, 384], sizes = [8, 128], strides = [1, 1]} : vector<8x512xf32> to vector<8x128xf32>
    %227 = arith.negf %226 : vector<8x128xf32>
    %228 = math.exp %227 : vector<8x128xf32>
    %cst_65 = arith.constant 1.000000e+00 : f32
    %229 = vector.broadcast %cst_65 : f32 to vector<8x128xf32>
    %230 = arith.addf %229, %228 : vector<8x128xf32>
    %231 = arith.divf %229, %230 : vector<8x128xf32>
    %232 = arith.mulf %223, %202 : vector<8x128xf32>
    %233 = arith.mulf %217, %225 : vector<8x128xf32>
    %234 = arith.addf %232, %233 : vector<8x128xf32>
    %235 = math.tanh %234 : vector<8x128xf32>
    %236 = arith.mulf %231, %235 : vector<8x128xf32>
    %c7_i32 = arith.constant 7 : i32
    %237 = arith.index_cast %c7_i32 : i32 to index
    %c0_66 = arith.constant 0 : index
    %c0_67 = arith.constant 0 : index
    %238 = vector.load %arg7[%237, %c0_66, %c0_67] : memref<8x8x512xf32, #tpu.memory_space<vmem>>, vector<1x8x512xf32>
    %239 = vector.shape_cast %238 : vector<1x8x512xf32> to vector<8x512xf32>
    %240 = arith.truncf %236 : vector<8x128xf32> to vector<8x128xbf16>
    %c0_68 = arith.constant 0 : index
    %c0_69 = arith.constant 0 : index
    %241 = vector.load %arg2[%c0_68, %c0_69] : memref<128x512xbf16, #tpu.memory_space<vmem>>, vector<128x512xbf16>
    %cst_70 = arith.constant dense<0.000000e+00> : vector<8x512xf32>
    %242 = tpu.matmul %240, %241, %cst_70 {dimension_numbers = #tpu.dot_dimension_numbers<[1], [0], [0], [1], [0, 0, 1, 1], [], []>} : vector<8x128xbf16>, vector<128x512xbf16>, vector<8x512xf32> -> vector<8x512xf32>
    %243 = arith.addf %239, %242 : vector<8x512xf32>
    %244 = vector.extract_strided_slice %243 {offsets = [0, 0], sizes = [8, 128], strides = [1, 1]} : vector<8x512xf32> to vector<8x128xf32>
    %245 = arith.negf %244 : vector<8x128xf32>
    %246 = math.exp %245 : vector<8x128xf32>
    %cst_71 = arith.constant 1.000000e+00 : f32
    %247 = vector.broadcast %cst_71 : f32 to vector<8x128xf32>
    %248 = arith.addf %247, %246 : vector<8x128xf32>
    %249 = arith.divf %247, %248 : vector<8x128xf32>
    %250 = vector.extract_strided_slice %243 {offsets = [0, 128], sizes = [8, 128], strides = [1, 1]} : vector<8x512xf32> to vector<8x128xf32>
    %251 = arith.negf %250 : vector<8x128xf32>
    %252 = math.exp %251 : vector<8x128xf32>
    %cst_72 = arith.constant 1.000000e+00 : f32
    %253 = vector.broadcast %cst_72 : f32 to vector<8x128xf32>
    %254 = arith.addf %253, %252 : vector<8x128xf32>
    %255 = arith.divf %253, %254 : vector<8x128xf32>
    %256 = vector.extract_strided_slice %243 {offsets = [0, 256], sizes = [8, 128], strides = [1, 1]} : vector<8x512xf32> to vector<8x128xf32>
    %257 = math.tanh %256 : vector<8x128xf32>
    %258 = vector.extract_strided_slice %243 {offsets = [0, 384], sizes = [8, 128], strides = [1, 1]} : vector<8x512xf32> to vector<8x128xf32>
    %259 = arith.negf %258 : vector<8x128xf32>
    %260 = math.exp %259 : vector<8x128xf32>
    %cst_73 = arith.constant 1.000000e+00 : f32
    %261 = vector.broadcast %cst_73 : f32 to vector<8x128xf32>
    %262 = arith.addf %261, %260 : vector<8x128xf32>
    %263 = arith.divf %261, %262 : vector<8x128xf32>
    %264 = arith.mulf %255, %234 : vector<8x128xf32>
    %265 = arith.mulf %249, %257 : vector<8x128xf32>
    %266 = arith.addf %264, %265 : vector<8x128xf32>
    %267 = math.tanh %266 : vector<8x128xf32>
    %268 = arith.mulf %263, %267 : vector<8x128xf32>
    %c8_i32 = arith.constant 8 : i32
    %c0_74 = arith.constant 0 : index
    %c0_75 = arith.constant 0 : index
    %269 = vector.load %arg4[%c0_74, %c0_75] : memref<1x128xf32, #tpu.memory_space<vmem>>, vector<1x128xf32>
    %270 = vector.broadcast %269 : vector<1x128xf32> to vector<8x128xf32>
    %271 = arith.mulf %268, %270 : vector<8x128xf32>
    %cst_76 = arith.constant dense<0.000000e+00> : vector<8xf32>
    %272 = vector.multi_reduction <add>, %271, %cst_76 [1] : vector<8x128xf32> to vector<8xf32>
    %273 = vector.shape_cast %272 : vector<8xf32> to vector<8x1xf32>
    %c0_77 = arith.constant 0 : index
    %c0_78 = arith.constant 0 : index
    %274 = vector.load %arg5[%c0_77, %c0_78] : memref<1x1xf32, #tpu.memory_space<vmem>>, vector<1x1xf32>
    %275 = vector.broadcast %274 : vector<1x1xf32> to vector<8x1xf32>
    %276 = arith.addf %273, %275 : vector<8x1xf32>
    %c0_79 = arith.constant 0 : index
    %c0_80 = arith.constant 0 : index
    %277 = vector.load %arg6[%c0_79, %c0_80] : memref<8x1xf32, #tpu.memory_space<vmem>>, vector<8x1xf32>
    tpu.vector_store %arg6[%c0_79, %c0_80], %276 {strides = array<i32>} : memref<8x1xf32, #tpu.memory_space<vmem>>, vector<8x1xf32>,
    return
  }
}

</mosaic_0001>

<llo_original>
// kernel: tpu_custom_call.1
$region0: #{tpu_custom_call.1}
  #allocation0 [shape = 'u32[]', space=smem, size = 0x4, offset = 0x4, fixed_abs, tag = 'smem constant byte address 0x4 - core index']
  #allocation1 [shape = 'u32[144,128]{1,0:T(1,128)}', space=vmem, size = 0x12000, scoped, tag = 'internal scratch']
  #allocation2 [shape = 'f32[8,8,512]{2,1,0:T(8,128)}', space=vmem, size = 0x20000, scoped, tag = 'scratch operand']
  #allocation3 [shape = 'f32[1,1]{1,0:T(1,128)S(1)}', space=vmem, size = 0x200, scoped, tag = 'scoped memory for tpu_custom_call.1']
  %s0 = inlined_call_operand.vmem [shape: f32[8,8,1], index: 0, kind: input, shape index: {}]
  %s1 = inlined_call_operand.vmem [shape: f32[1,512], index: 1, kind: input, shape index: {}]
  %s2 = inlined_call_operand.hbm [shape: bf16[128,512], index: 2, kind: input, shape index: {}]
  %s3 = inlined_call_operand.vmem [shape: f32[1,512], index: 3, kind: input, shape index: {}]
  %s4 = inlined_call_operand.vmem [shape: f32[1,128], index: 4, kind: input, shape index: {}]
  %s5 = inlined_call_operand.<no memory space> [shape: f32[1,1], index: 5, kind: input, shape index: {}]
  %s6 = inlined_call_operand.vmem [shape: f32[8,1], index: 6, kind: output, shape index: {}]
  %s7 = sld [smem:[#allocation0]]
  $region38: #{tpu_custom_call.1} parent=0
    _
  %s9 = ssub.s32 1, %s7
  %s10 = scalar_select 0, %s9, %s7
  %v11 = vstv %s5
  %12 = vst [vmem:[#allocation3] sm:$0x1] %v11
  $region1: #{tpu_custom_call.1} parent=0
    #allocation4 [shape = 'u8[131072]{0}', space=vmem, size = 0x20000, scoped, tag = 'input window, operand 2, single buffered']
    #allocation5 [shape = 's32[1]{0}', space=sflag, size = 0x4, scoped, tag = 'scoped memory for tpu_custom_call.1']
    %13 = vsyncpa [#allocation5], 0
    // Predicated region
    $region2: #{tpu_custom_call.1} parent=1 // pred_check
      _
    $region3: #{tpu_custom_call.1} parent=1 // pred_check_branch
      %15 = sbr.rel (0) target = $region5
    $region4: #{tpu_custom_call.1} parent=1 // pred_region
      _
    $region5: #{tpu_custom_call.1} parent=1 // pred_fallthru
      _
    // Predicated region
    $region6: #{tpu_custom_call.1} parent=1 // pred_check
      _
    $region7: #{tpu_custom_call.1} parent=1 // pred_check_branch
      %17 = sbr.rel (0) target = $region9
    $region8: #{tpu_custom_call.1} parent=1 // pred_region
      _
    $region9: #{tpu_custom_call.1} parent=1 // pred_fallthru
      _
    // Predicated region
    $region10: #{tpu_custom_call.1} parent=1 // pred_check
      _
    $region11: #{tpu_custom_call.1} parent=1 // pred_check_branch
      %19 = sbr.rel (0) target = $region13
    $region12: #{tpu_custom_call.1} parent=1 // pred_region
      %s21 = ssub.s32 4096, 4096
      %22 = vsyncadd [#allocation5], %s21
      %s23 = sshll.u32 [#allocation4], 4
      %s24 = int_to_ptr.vmem [resolvable:$true] %s23
      %29 = dma.hbm_to_vmem [thread:$0]  %s2, 4096, %s24, [#allocation5], 256, 256, 16
    $region13: #{tpu_custom_call.1} parent=1 // pred_fallthru
      _
    // Predicated region
    $region14: #{tpu_custom_call.1} parent=1 // pred_check
      _
    $region15: #{tpu_custom_call.1} parent=1 // pred_check_branch
      %31 = sbr.rel (0) target = $region17
    $region16: #{tpu_custom_call.1} parent=1 // pred_region
      _
    $region17: #{tpu_custom_call.1} parent=1 // pred_fallthru
      _
    // Predicated region
    $region18: #{tpu_custom_call.1} parent=1 // pred_check
      _
    $region19: #{tpu_custom_call.1} parent=1 // pred_check_branch
      %33 = sbr.rel (0) target = $region21
    $region20: #{tpu_custom_call.1} parent=1 // pred_region
      _
    $region21: #{tpu_custom_call.1} parent=1 // pred_fallthru
      _
    // Predicated region
    $region22: #{tpu_custom_call.1} parent=1 // pred_check
      _
    $region23: #{tpu_custom_call.1} parent=1 // pred_check_branch
      %35 = sbr.rel (0) target = $region25
    $region24: #{tpu_custom_call.1} parent=1 // pred_region
      _
    $region25: #{tpu_custom_call.1} parent=1 // pred_fallthru
      _
    // Predicated region
    $region26: #{tpu_custom_call.1} parent=1 // pred_check
      _
    $region27: #{tpu_custom_call.1} parent=1 // pred_check_branch
      %37 = sbr.rel (0) target = $region29
    $region28: #{tpu_custom_call.1} parent=1 // pred_region
      %38 = dma.done [#allocation5], 4096
    $region29: #{tpu_custom_call.1} parent=1 // pred_fallthru
      _
    %v40 = vld [vmem:[%s0] sm:$0xff]
    %v41 = vld [vmem:[%s0 + $0x8] sm:$0xff]
    %v42 = vld [vmem:[%s0 + $0x10] sm:$0xff]
    %v43 = vld [vmem:[%s0 + $0x18] sm:$0xff]
    %v44 = vld [vmem:[%s0 + $0x20] sm:$0xff]
    %v45 = vld [vmem:[%s0 + $0x28] sm:$0xff]
    %v46 = vld [vmem:[%s0 + $0x30] sm:$0xff]
    %v47 = vld [vmem:[%s0 + $0x38] sm:$0xff]
    %v48 = vld [vmem:[%s1] sm:$0xf]
    %50 = vset.pattern.permute.xlu0 0
    %51 = vperm.xlu0 %50, %v40
    %v52 = vpop.permute.xlu0 %51
    %55 = vset.pattern.permute.xlu0 0
    %56 = vperm.xlu0 %55, %v41
    %v57 = vpop.permute.xlu0 %56
    %60 = vset.pattern.permute.xlu0 0
    %61 = vperm.xlu0 %60, %v42
    %v62 = vpop.permute.xlu0 %61
    %65 = vset.pattern.permute.xlu0 0
    %66 = vperm.xlu0 %65, %v43
    %v67 = vpop.permute.xlu0 %66
    %70 = vset.pattern.permute.xlu0 0
    %71 = vperm.xlu0 %70, %v44
    %v72 = vpop.permute.xlu0 %71
    %75 = vset.pattern.permute.xlu0 0
    %76 = vperm.xlu0 %75, %v45
    %v77 = vpop.permute.xlu0 %76
    %80 = vset.pattern.permute.xlu0 0
    %81 = vperm.xlu0 %80, %v46
    %v82 = vpop.permute.xlu0 %81
    %85 = vset.pattern.permute.xlu0 0
    %86 = vperm.xlu0 %85, %v47
    %v87 = vpop.permute.xlu0 %86
    %v90 = vlaneseq
    %v91 = vshrl.u32 %v90, 7
    %v92 = vsub.s32 0, %v91
    %v93 = vrot.slane %v48, %v92
    %v94 = vlaneseq
    %v95 = vshrl.u32 %v94, 7
    %v96 = vsub.s32 1, %v95
    %v97 = vrot.slane %v48, %v96
    %v98 = vlaneseq
    %v99 = vshrl.u32 %v98, 7
    %v100 = vsub.s32 2, %v99
    %v101 = vrot.slane %v48, %v100
    %v102 = vlaneseq
    %v103 = vshrl.u32 %v102, 7
    %v104 = vsub.s32 3, %v103
    %v105 = vrot.slane %v48, %v104
    %v110 = vmul.f32 %v52, %v93
    %v111 = vmul.f32 %v52, %v97
    %v112 = vmul.f32 %v52, %v101
    %v113 = vmul.f32 %v52, %v105
    %v114 = vmul.f32 %v57, %v93
    %v115 = vmul.f32 %v57, %v97
    %v116 = vmul.f32 %v57, %v101
    %v117 = vmul.f32 %v57, %v105
    %v118 = vmul.f32 %v62, %v93
    %v119 = vmul.f32 %v62, %v97
    %v120 = vmul.f32 %v62, %v101
    %v121 = vmul.f32 %v62, %v105
    %v122 = vmul.f32 %v67, %v93
    %v123 = vmul.f32 %v67, %v97
    %v124 = vmul.f32 %v67, %v101
    %v125 = vmul.f32 %v67, %v105
    %v126 = vmul.f32 %v72, %v93
    %v127 = vmul.f32 %v72, %v97
    %v128 = vmul.f32 %v72, %v101
    %v129 = vmul.f32 %v72, %v105
    %v130 = vmul.f32 %v77, %v93
    %v131 = vmul.f32 %v77, %v97
    %v132 = vmul.f32 %v77, %v101
    %v133 = vmul.f32 %v77, %v105
    %v134 = vmul.f32 %v82, %v93
    %v135 = vmul.f32 %v82, %v97
    %v136 = vmul.f32 %v82, %v101
    %v137 = vmul.f32 %v82, %v105
    %v138 = vmul.f32 %v87, %v93
    %v139 = vmul.f32 %v87, %v97
    %v140 = vmul.f32 %v87, %v101
    %v141 = vmul.f32 %v87, %v105
    %v142 = vld [vmem:[%s3] sm:$0xf]
    %v144 = vlaneseq
    %v145 = vshrl.u32 %v144, 7
    %v146 = vsub.s32 0, %v145
    %v147 = vrot.slane %v142, %v146
    %v148 = vlaneseq
    %v149 = vshrl.u32 %v148, 7
    %v150 = vsub.s32 1, %v149
    %v151 = vrot.slane %v142, %v150
    %v152 = vlaneseq
    %v153 = vshrl.u32 %v152, 7
    %v154 = vsub.s32 2, %v153
    %v155 = vrot.slane %v142, %v154
    %v156 = vlaneseq
    %v157 = vshrl.u32 %v156, 7
    %v158 = vsub.s32 3, %v157
    %v159 = vrot.slane %v142, %v158
    %v164 = vadd.f32 %v110, %v147
    %v165 = vadd.f32 %v111, %v151
    %v166 = vadd.f32 %v112, %v155
    %v167 = vadd.f32 %v113, %v159
    %v168 = vadd.f32 %v114, %v147
    %v169 = vadd.f32 %v115, %v151
    %v170 = vadd.f32 %v116, %v155
    %v171 = vadd.f32 %v117, %v159
    %v172 = vadd.f32 %v118, %v147
    %v173 = vadd.f32 %v119, %v151
    %v174 = vadd.f32 %v120, %v155
    %v175 = vadd.f32 %v121, %v159
    %v176 = vadd.f32 %v122, %v147
    %v177 = vadd.f32 %v123, %v151
    %v178 = vadd.f32 %v124, %v155
    %v179 = vadd.f32 %v125, %v159
    %v180 = vadd.f32 %v126, %v147
    %v181 = vadd.f32 %v127, %v151
    %v182 = vadd.f32 %v128, %v155
    %v183 = vadd.f32 %v129, %v159
    %v184 = vadd.f32 %v130, %v147
    %v185 = vadd.f32 %v131, %v151
    %v186 = vadd.f32 %v132, %v155
    %v187 = vadd.f32 %v133, %v159
    %v188 = vadd.f32 %v134, %v147
    %v189 = vadd.f32 %v135, %v151
    %v190 = vadd.f32 %v136, %v155
    %v191 = vadd.f32 %v137, %v159
    %v192 = vadd.f32 %v138, %v147
    %v193 = vadd.f32 %v139, %v151
    %v194 = vadd.f32 %v140, %v155
    %v195 = vadd.f32 %v141, %v159
    %196 = vst [vmem:[#allocation2] sm:$0xff] %v164
    %197 = vst [vmem:[#allocation2 + $0x8] sm:$0xff] %v165
    %198 = vst [vmem:[#allocation2 + $0x10] sm:$0xff] %v166
    %199 = vst [vmem:[#allocation2 + $0x18] sm:$0xff] %v167
    %200 = vst [vmem:[#allocation2 + $0x20] sm:$0xff] %v168
    %201 = vst [vmem:[#allocation2 + $0x28] sm:$0xff] %v169
    %202 = vst [vmem:[#allocation2 + $0x30] sm:$0xff] %v170
    %203 = vst [vmem:[#allocation2 + $0x38] sm:$0xff] %v171
    %204 = vst [vmem:[#allocation2 + $0x40] sm:$0xff] %v172
    %205 = vst [vmem:[#allocation2 + $0x48] sm:$0xff] %v173
    %206 = vst [vmem:[#allocation2 + $0x50] sm:$0xff] %v174
    %207 = vst [vmem:[#allocation2 + $0x58] sm:$0xff] %v175
    %208 = vst [vmem:[#allocation2 + $0x60] sm:$0xff] %v176
    %209 = vst [vmem:[#allocation2 + $0x68] sm:$0xff] %v177
    %210 = vst [vmem:[#allocation2 + $0x70] sm:$0xff] %v178
    %211 = vst [vmem:[#allocation2 + $0x78] sm:$0xff] %v179
    %212 = vst [vmem:[#allocation2 + $0x80] sm:$0xff] %v180
    %213 = vst [vmem:[#allocation2 + $0x88] sm:$0xff] %v181
    %214 = vst [vmem:[#allocation2 + $0x90] sm:$0xff] %v182
    %215 = vst [vmem:[#allocation2 + $0x98] sm:$0xff] %v183
    %216 = vst [vmem:[#allocation2 + $0xa0] sm:$0xff] %v184
    %217 = vst [vmem:[#allocation2 + $0xa8] sm:$0xff] %v185
    %218 = vst [vmem:[#allocation2 + $0xb0] sm:$0xff] %v186
    %219 = vst [vmem:[#allocation2 + $0xb8] sm:$0xff] %v187
    %220 = vst [vmem:[#allocation2 + $0xc0] sm:$0xff] %v188
    %221 = vst [vmem:[#allocation2 + $0xc8] sm:$0xff] %v189
    %222 = vst [vmem:[#allocation2 + $0xd0] sm:$0xff] %v190
    %223 = vst [vmem:[#allocation2 + $0xd8] sm:$0xff] %v191
    %224 = vst [vmem:[#allocation2 + $0xe0] sm:$0xff] %v192
    %225 = vst [vmem:[#allocation2 + $0xe8] sm:$0xff] %v193
    %226 = vst [vmem:[#allocation2 + $0xf0] sm:$0xff] %v194
    %227 = vst [vmem:[#allocation2 + $0xf8] sm:$0xff] %v195
    %v228 = vld [vmem:[#allocation2] sm:$0xff]
    %v229 = vld [vmem:[#allocation2 + $0x8] sm:$0xff]
    %v230 = vld [vmem:[#allocation2 + $0x10] sm:$0xff]
    %v231 = vld [vmem:[#allocation2 + $0x18] sm:$0xff]
    %v232 = vld [vmem:[#allocation4] sm:$0xff]
    %v233 = vld [vmem:[#allocation4 + $0x8] sm:$0xff]
    %v234 = vld [vmem:[#allocation4 + $0x10] sm:$0xff]
    %v235 = vld [vmem:[#allocation4 + $0x18] sm:$0xff]
    %v236 = vld [vmem:[#allocation4 + $0x20] sm:$0xff]
    %v237 = vld [vmem:[#allocation4 + $0x28] sm:$0xff]
    %v238 = vld [vmem:[#allocation4 + $0x30] sm:$0xff]
    %v239 = vld [vmem:[#allocation4 + $0x38] sm:$0xff]
    %v240 = vld [vmem:[#allocation4 + $0x40] sm:$0xff]
    %v241 = vld [vmem:[#allocation4 + $0x48] sm:$0xff]
    %v242 = vld [vmem:[#allocation4 + $0x50] sm:$0xff]
    %v243 = vld [vmem:[#allocation4 + $0x58] sm:$0xff]
    %v244 = vld [vmem:[#allocation4 + $0x60] sm:$0xff]
    %v245 = vld [vmem:[#allocation4 + $0x68] sm:$0xff]
    %v246 = vld [vmem:[#allocation4 + $0x70] sm:$0xff]
    %v247 = vld [vmem:[#allocation4 + $0x78] sm:$0xff]
    %v248 = vld [vmem:[#allocation4 + $0x80] sm:$0xff]
    %v249 = vld [vmem:[#allocation4 + $0x88] sm:$0xff]
    %v250 = vld [vmem:[#allocation4 + $0x90] sm:$0xff]
    %v251 = vld [vmem:[#allocation4 + $0x98] sm:$0xff]
    %v252 = vld [vmem:[#allocation4 + $0xa0] sm:$0xff]
    %v253 = vld [vmem:[#allocation4 + $0xa8] sm:$0xff]
    %v254 = vld [vmem:[#allocation4 + $0xb0] sm:$0xff]
    %v255 = vld [vmem:[#allocation4 + $0xb8] sm:$0xff]
    %v256 = vld [vmem:[#allocation4 + $0xc0] sm:$0xff]
    %v257 = vld [vmem:[#allocation4 + $0xc8] sm:$0xff]
    %v258 = vld [vmem:[#allocation4 + $0xd0] sm:$0xff]
    %v259 = vld [vmem:[#allocation4 + $0xd8] sm:$0xff]
    %v260 = vld [vmem:[#allocation4 + $0xe0] sm:$0xff]
    %v261 = vld [vmem:[#allocation4 + $0xe8] sm:$0xff]
    %v262 = vld [vmem:[#allocation4 + $0xf0] sm:$0xff]
    %v263 = vld [vmem:[#allocation4 + $0xf8] sm:$0xff]
    %v296 = vunpack.c.l.b16 %v232
    %v297 = vunpack.c.h.b16 %v232
    %v298 = vunpack.c.l.b16 %v233
    %v299 = vunpack.c.h.b16 %v233
    %v300 = vunpack.c.l.b16 %v234
    %v301 = vunpack.c.h.b16 %v234
    %v302 = vunpack.c.l.b16 %v235
    %v303 = vunpack.c.h.b16 %v235
    %v304 = vunpack.c.l.b16 %v236
    %v305 = vunpack.c.h.b16 %v236
    %v306 = vunpack.c.l.b16 %v237
    %v307 = vunpack.c.h.b16 %v237
    %v308 = vunpack.c.l.b16 %v238
    %v309 = vunpack.c.h.b16 %v238
    %v310 = vunpack.c.l.b16 %v239
    %v311 = vunpack.c.h.b16 %v239
    %v312 = vunpack.c.l.b16 %v240
    %v313 = vunpack.c.h.b16 %v240
    %v314 = vunpack.c.l.b16 %v241
    %v315 = vunpack.c.h.b16 %v241
    %v316 = vunpack.c.l.b16 %v242
    %v317 = vunpack.c.h.b16 %v242
    %v318 = vunpack.c.l.b16 %v243
    %v319 = vunpack.c.h.b16 %v243
    %v320 = vunpack.c.l.b16 %v244
    %v321 = vunpack.c.h.b16 %v244
    %v322 = vunpack.c.l.b16 %v245
    %v323 = vunpack.c.h.b16 %v245
    %v324 = vunpack.c.l.b16 %v246
    %v325 = vunpack.c.h.b16 %v246
    %v326 = vunpack.c.l.b16 %v247
    %v327 = vunpack.c.h.b16 %v247
    %v328 = vunpack.c.l.b16 %v248
    %v329 = vunpack.c.h.b16 %v248
    %v330 = vunpack.c.l.b16 %v249
    %v331 = vunpack.c.h.b16 %v249
    %v332 = vunpack.c.l.b16 %v250
    %v333 = vunpack.c.h.b16 %v250
    %v334 = vunpack.c.l.b16 %v251
    %v335 = vunpack.c.h.b16 %v251
    %v336 = vunpack.c.l.b16 %v252
    %v337 = vunpack.c.h.b16 %v252
    %v338 = vunpack.c.l.b16 %v253
    %v339 = vunpack.c.h.b16 %v253
    %v340 = vunpack.c.l.b16 %v254
    %v341 = vunpack.c.h.b16 %v254
    %v342 = vunpack.c.l.b16 %v255
    %v343 = vunpack.c.h.b16 %v255
    %v344 = vunpack.c.l.b16 %v256
    %v345 = vunpack.c.h.b16 %v256
    %v346 = vunpack.c.l.b16 %v257
    %v347 = vunpack.c.h.b16 %v257
    %v348 = vunpack.c.l.b16 %v258
    %v349 = vunpack.c.h.b16 %v258
    %v350 = vunpack.c.l.b16 %v259
    %v351 = vunpack.c.h.b16 %v259
    %v352 = vunpack.c.l.b16 %v260
    %v353 = vunpack.c.h.b16 %v260
    %v354 = vunpack.c.l.b16 %v261
    %v355 = vunpack.c.h.b16 %v261
    %v356 = vunpack.c.l.b16 %v262
    %v357 = vunpack.c.h.b16 %v262
    %v358 = vunpack.c.l.b16 %v263
    %v359 = vunpack.c.h.b16 %v263
    %v360 = vpack.c.b16 %v300, %v296
    %v361 = vpack.c.b16 %v301, %v297
    %v362 = vpack.c.b16 %v302, %v298
    %v363 = vpack.c.b16 %v303, %v299
    %v364 = vpack.c.b16 %v308, %v304
    %v365 = vpack.c.b16 %v309, %v305
    %v366 = vpack.c.b16 %v310, %v306
    %v367 = vpack.c.b16 %v311, %v307
    %v368 = vpack.c.b16 %v316, %v312
    %v369 = vpack.c.b16 %v317, %v313
    %v370 = vpack.c.b16 %v318, %v314
    %v371 = vpack.c.b16 %v319, %v315
    %v372 = vpack.c.b16 %v324, %v320
    %v373 = vpack.c.b16 %v325, %v321
    %v374 = vpack.c.b16 %v326, %v322
    %v375 = vpack.c.b16 %v327, %v323
    %v376 = vpack.c.b16 %v332, %v328
    %v377 = vpack.c.b16 %v333, %v329
    %v378 = vpack.c.b16 %v334, %v330
    %v379 = vpack.c.b16 %v335, %v331
    %v380 = vpack.c.b16 %v340, %v336
    %v381 = vpack.c.b16 %v341, %v337
    %v382 = vpack.c.b16 %v342, %v338
    %v383 = vpack.c.b16 %v343, %v339
    %v384 = vpack.c.b16 %v348, %v344
    %v385 = vpack.c.b16 %v349, %v345
    %v386 = vpack.c.b16 %v350, %v346
    %v387 = vpack.c.b16 %v351, %v347
    %v388 = vpack.c.b16 %v356, %v352
    %v389 = vpack.c.b16 %v357, %v353
    %v390 = vpack.c.b16 %v358, %v354
    %v391 = vpack.c.b16 %v359, %v355
    %424 = vmatprep.subr.bf16.mxu0 %v361
    %425 = vmatpush1.bf16.msra.mxu0 %v360
    %426 = vmatprep.subr.bf16.mxu0 %v365
    %427 = vmatpush1.bf16.msra.mxu0 %v364
    %428 = vmatprep.subr.bf16.mxu0 %v369
    %429 = vmatpush1.bf16.msra.mxu0 %v368
    %430 = vmatprep.subr.bf16.mxu0 %v373
    %431 = vmatpush1.bf16.msra.mxu0 %v372
    %432 = vmatprep.subr.bf16.mxu0 %v377
    %433 = vmatpush1.bf16.msra.mxu0 %v376
    %434 = vmatprep.subr.bf16.mxu0 %v381
    %435 = vmatpush1.bf16.msra.mxu0 %v380
    %436 = vmatprep.subr.bf16.mxu0 %v385
    %437 = vmatpush1.bf16.msra.mxu0 %v384
    %438 = vmatprep.subr.bf16.mxu0 %v389
    %439 = vmatpush1.bf16.msra.mxu0 %v388
    %440 = vmatprep.subr.bf16.mxu0 0
    %441 = vmatpush1.bf16.msra.mxu0 0
    %442 = vmatprep.subr.bf16.mxu0 0
    %443 = vmatpush1.bf16.msra.mxu0 0
    %444 = vmatprep.subr.bf16.mxu0 0
    %445 = vmatpush1.bf16.msra.mxu0 0
    %446 = vmatprep.subr.bf16.mxu0 0
    %447 = vmatpush1.bf16.msra.mxu0 0
    %448 = vmatprep.subr.bf16.mxu0 0
    %449 = vmatpush1.bf16.msra.mxu0 0
    %450 = vmatprep.subr.bf16.mxu0 0
    %451 = vmatpush1.bf16.msra.mxu0 0
    %452 = vmatprep.subr.bf16.mxu0 0
    %453 = vmatpush1.bf16.msra.mxu0 0
    %454 = vmatprep.subr.bf16.mxu0 0
    %455 = vmatpush1.bf16.msra.mxu0 0
    %456 = vmatprep.mubr.bf16.mxu0 0
    %457 = vmatmul.mubr.bf16.gmra.mrb[0].mxu0 0
    %v458 = vpop.f32.mrb[0].mxu0
    %v459 = vadd.f32 0.0, %v458
    %v460 = vpop.f32.mrb[0].mxu0
    %v461 = vadd.f32 0.0, %v460
    %v462 = vpop.f32.mrb[0].mxu0
    %v463 = vpop.f32.mrb[0].mxu0
    %464 = vdwg.mxu0
    %465 = vmatprep.subr.bf16.mxu0 %v363
    %466 = vmatpush1.bf16.msra.mxu0 %v362
    %467 = vmatprep.subr.bf16.mxu0 %v367
    %468 = vmatpush1.bf16.msra.mxu0 %v366
    %469 = vmatprep.subr.bf16.mxu0 %v371
    %470 = vmatpush1.bf16.msra.mxu0 %v370
    %471 = vmatprep.subr.bf16.mxu0 %v375
    %472 = vmatpush1.bf16.msra.mxu0 %v374
    %473 = vmatprep.subr.bf16.mxu0 %v379
    %474 = vmatpush1.bf16.msra.mxu0 %v378
    %475 = vmatprep.subr.bf16.mxu0 %v383
    %476 = vmatpush1.bf16.msra.mxu0 %v382
    %477 = vmatprep.subr.bf16.mxu0 %v387
    %478 = vmatpush1.bf16.msra.mxu0 %v386
    %479 = vmatprep.subr.bf16.mxu0 %v391
    %480 = vmatpush1.bf16.msra.mxu0 %v390
    %481 = vmatprep.subr.bf16.mxu0 0
    %482 = vmatpush1.bf16.msra.mxu0 0
    %483 = vmatprep.subr.bf16.mxu0 0
    %484 = vmatpush1.bf16.msra.mxu0 0
    %485 = vmatprep.subr.bf16.mxu0 0
    %486 = vmatpush1.bf16.msra.mxu0 0
    %487 = vmatprep.subr.bf16.mxu0 0
    %488 = vmatpush1.bf16.msra.mxu0 0
    %489 = vmatprep.subr.bf16.mxu0 0
    %490 = vmatpush1.bf16.msra.mxu0 0
    %491 = vmatprep.subr.bf16.mxu0 0
    %492 = vmatpush1.bf16.msra.mxu0 0
    %493 = vmatprep.subr.bf16.mxu0 0
    %494 = vmatpush1.bf16.msra.mxu0 0
    %495 = vmatprep.subr.bf16.mxu0 0
    %496 = vmatpush1.bf16.msra.mxu0 0
    %497 = vmatprep.mubr.bf16.mxu0 0
    %498 = vmatmul.mubr.bf16.gmra.mrb[0].mxu0 0
    %v499 = vpop.f32.mrb[0].mxu0
    %v500 = vadd.f32 0.0, %v499
    %v501 = vpop.f32.mrb[0].mxu0
    %v502 = vadd.f32 0.0, %v501
    %v503 = vpop.f32.mrb[0].mxu0
    %v504 = vpop.f32.mrb[0].mxu0
    %505 = vdwg.mxu0
    %v506 = vadd.f32 %v228, %v459
    %v507 = vadd.f32 %v229, %v461
    %v508 = vadd.f32 %v230, %v500
    %v509 = vadd.f32 %v231, %v502
    %v510 = vxor.u32 %v506, 2147483648
    %v511 = vmul.f32 %v510, 1.442695
    %v512 = vpow.pop %v511
    %v513 = vadd.f32 %v512, 1.0
    %v514 = vrcp.pop %v513
    %v515 = vmul.f32 1.0, %v514
    %v516 = vxor.u32 %v507, 2147483648
    %v517 = vmul.f32 %v516, 1.442695
    %v518 = vpow.pop %v517
    %v519 = vadd.f32 %v518, 1.0
    %v520 = vrcp.pop %v519
    %v521 = vmul.f32 1.0, %v520
    %v522 = vtanh.pop %v508
    %v523 = vxor.u32 %v509, 2147483648
    %v524 = vmul.f32 %v523, 1.442695
    %v525 = vpow.pop %v524
    %v526 = vadd.f32 %v525, 1.0
    %v527 = vrcp.pop %v526
    %v528 = vmul.f32 1.0, %v527
    %v529 = vmul.f32 %v521, 0.0
    %v530 = vmul.f32 %v515, %v522
    %v531 = vadd.f32 %v529, %v530
    %v532 = vtanh.pop %v531
    %v533 = vmul.f32 %v528, %v532
    %s534 = scalar_lea.vmem [#allocation2], 32
    %v535 = vld [vmem:[%s534] sm:$0xff]
    %v536 = vld [vmem:[%s534 + $0x8] sm:$0xff]
    %v537 = vld [vmem:[%s534 + $0x10] sm:$0xff]
    %v538 = vld [vmem:[%s534 + $0x18] sm:$0xff]
    %v539 = vpack.c.bf16 %v533, %v533
    %540 = vmatprep.subr.bf16.mxu0 %v361
    %541 = vmatpush1.bf16.msra.mxu0 %v360
    %542 = vmatprep.subr.bf16.mxu0 %v365
    %543 = vmatpush1.bf16.msra.mxu0 %v364
    %544 = vmatprep.subr.bf16.mxu0 %v369
    %545 = vmatpush1.bf16.msra.mxu0 %v368
    %546 = vmatprep.subr.bf16.mxu0 %v373
    %547 = vmatpush1.bf16.msra.mxu0 %v372
    %548 = vmatprep.subr.bf16.mxu0 %v377
    %549 = vmatpush1.bf16.msra.mxu0 %v376
    %550 = vmatprep.subr.bf16.mxu0 %v381
    %551 = vmatpush1.bf16.msra.mxu0 %v380
    %552 = vmatprep.subr.bf16.mxu0 %v385
    %553 = vmatpush1.bf16.msra.mxu0 %v384
    %554 = vmatprep.subr.bf16.mxu0 %v389
    %555 = vmatpush1.bf16.msra.mxu0 %v388
    %556 = vmatprep.subr.bf16.mxu0 0
    %557 = vmatpush1.bf16.msra.mxu0 0
    %558 = vmatprep.subr.bf16.mxu0 0
    %559 = vmatpush1.bf16.msra.mxu0 0
    %560 = vmatprep.subr.bf16.mxu0 0
    %561 = vmatpush1.bf16.msra.mxu0 0
    %562 = vmatprep.subr.bf16.mxu0 0
    %563 = vmatpush1.bf16.msra.mxu0 0
    %564 = vmatprep.subr.bf16.mxu0 0
    %565 = vmatpush1.bf16.msra.mxu0 0
    %566 = vmatprep.subr.bf16.mxu0 0
    %567 = vmatpush1.bf16.msra.mxu0 0
    %568 = vmatprep.subr.bf16.mxu0 0
    %569 = vmatpush1.bf16.msra.mxu0 0
    %570 = vmatprep.subr.bf16.mxu0 0
    %571 = vmatpush1.bf16.msra.mxu0 0
    %572 = vmatprep.mubr.bf16.mxu0 0
    %573 = vmatmul.mubr.bf16.gmra.mrb[0].mxu0 %v539
    %v574 = vpop.f32.mrb[0].mxu0
    %v575 = vadd.f32 0.0, %v574
    %v576 = vpop.f32.mrb[0].mxu0
    %v577 = vadd.f32 0.0, %v576
    %v578 = vpop.f32.mrb[0].mxu0
    %v579 = vpop.f32.mrb[0].mxu0
    %580 = vdwg.mxu0
    %581 = vmatprep.subr.bf16.mxu0 %v363
    %582 = vmatpush1.bf16.msra.mxu0 %v362
    %583 = vmatprep.subr.bf16.mxu0 %v367
    %584 = vmatpush1.bf16.msra.mxu0 %v366
    %585 = vmatprep.subr.bf16.mxu0 %v371
    %586 = vmatpush1.bf16.msra.mxu0 %v370
    %587 = vmatprep.subr.bf16.mxu0 %v375
    %588 = vmatpush1.bf16.msra.mxu0 %v374
    %589 = vmatprep.subr.bf16.mxu0 %v379
    %590 = vmatpush1.bf16.msra.mxu0 %v378
    %591 = vmatprep.subr.bf16.mxu0 %v383
    %592 = vmatpush1.bf16.msra.mxu0 %v382
    %593 = vmatprep.subr.bf16.mxu0 %v387
    %594 = vmatpush1.bf16.msra.mxu0 %v386
    %595 = vmatprep.subr.bf16.mxu0 %v391
    %596 = vmatpush1.bf16.msra.mxu0 %v390
    %597 = vmatprep.subr.bf16.mxu0 0
    %598 = vmatpush1.bf16.msra.mxu0 0
    %599 = vmatprep.subr.bf16.mxu0 0
    %600 = vmatpush1.bf16.msra.mxu0 0
    %601 = vmatprep.subr.bf16.mxu0 0
    %602 = vmatpush1.bf16.msra.mxu0 0
    %603 = vmatprep.subr.bf16.mxu0 0
    %604 = vmatpush1.bf16.msra.mxu0 0
    %605 = vmatprep.subr.bf16.mxu0 0
    %606 = vmatpush1.bf16.msra.mxu0 0
    %607 = vmatprep.subr.bf16.mxu0 0
    %608 = vmatpush1.bf16.msra.mxu0 0
    %609 = vmatprep.subr.bf16.mxu0 0
    %610 = vmatpush1.bf16.msra.mxu0 0
    %611 = vmatprep.subr.bf16.mxu0 0
    %612 = vmatpush1.bf16.msra.mxu0 0
    %613 = vmatprep.mubr.bf16.mxu0 0
    %614 = vmatmul.mubr.bf16.gmra.mrb[0].mxu0 %v539
    %v615 = vpop.f32.mrb[0].mxu0
    %v616 = vadd.f32 0.0, %v615
    %v617 = vpop.f32.mrb[0].mxu0
    %v618 = vadd.f32 0.0, %v617
    %v619 = vpop.f32.mrb[0].mxu0
    %v620 = vpop.f32.mrb[0].mxu0
    %621 = vdwg.mxu0
    %v622 = vadd.f32 %v535, %v575
    %v623 = vadd.f32 %v536, %v577
    %v624 = vadd.f32 %v537, %v616
    %v625 = vadd.f32 %v538, %v618
    %v626 = vxor.u32 %v622, 2147483648
    %v627 = vmul.f32 %v626, 1.442695
    %v628 = vpow.pop %v627
    %v629 = vadd.f32 %v628, 1.0
    %v630 = vrcp.pop %v629
    %v631 = vmul.f32 1.0, %v630
    %v632 = vxor.u32 %v623, 2147483648
    %v633 = vmul.f32 %v632, 1.442695
    %v634 = vpow.pop %v633
    %v635 = vadd.f32 %v634, 1.0
    %v636 = vrcp.pop %v635
    %v637 = vmul.f32 1.0, %v636
    %v638 = vtanh.pop %v624
    %v639 = vxor.u32 %v625, 2147483648
    %v640 = vmul.f32 %v639, 1.442695
    %v641 = vpow.pop %v640
    %v642 = vadd.f32 %v641, 1.0
    %v643 = vrcp.pop %v642
    %v644 = vmul.f32 1.0, %v643
    %v645 = vmul.f32 %v637, %v531
    %v646 = vmul.f32 %v631, %v638
    %v647 = vadd.f32 %v645, %v646
    %v648 = vtanh.pop %v647
    %v649 = vmul.f32 %v644, %v648
    %s650 = scalar_lea.vmem [#allocation2], 64
    %v651 = vld [vmem:[%s650] sm:$0xff]
    %v652 = vld [vmem:[%s650 + $0x8] sm:$0xff]
    %v653 = vld [vmem:[%s650 + $0x10] sm:$0xff]
    %v654 = vld [vmem:[%s650 + $0x18] sm:$0xff]
    %v655 = vpack.c.bf16 %v649, %v649
    %656 = vmatprep.subr.bf16.mxu0 %v361
    %657 = vmatpush1.bf16.msra.mxu0 %v360
    %658 = vmatprep.subr.bf16.mxu0 %v365
    %659 = vmatpush1.bf16.msra.mxu0 %v364
    %660 = vmatprep.subr.bf16.mxu0 %v369
    %661 = vmatpush1.bf16.msra.mxu0 %v368
    %662 = vmatprep.subr.bf16.mxu0 %v373
    %663 = vmatpush1.bf16.msra.mxu0 %v372
    %664 = vmatprep.subr.bf16.mxu0 %v377
    %665 = vmatpush1.bf16.msra.mxu0 %v376
    %666 = vmatprep.subr.bf16.mxu0 %v381
    %667 = vmatpush1.bf16.msra.mxu0 %v380
    %668 = vmatprep.subr.bf16.mxu0 %v385
    %669 = vmatpush1.bf16.msra.mxu0 %v384
    %670 = vmatprep.subr.bf16.mxu0 %v389
    %671 = vmatpush1.bf16.msra.mxu0 %v388
    %672 = vmatprep.subr.bf16.mxu0 0
    %673 = vmatpush1.bf16.msra.mxu0 0
    %674 = vmatprep.subr.bf16.mxu0 0
    %675 = vmatpush1.bf16.msra.mxu0 0
    %676 = vmatprep.subr.bf16.mxu0 0
    %677 = vmatpush1.bf16.msra.mxu0 0
    %678 = vmatprep.subr.bf16.mxu0 0
    %679 = vmatpush1.bf16.msra.mxu0 0
    %680 = vmatprep.subr.bf16.mxu0 0
    %681 = vmatpush1.bf16.msra.mxu0 0
    %682 = vmatprep.subr.bf16.mxu0 0
    %683 = vmatpush1.bf16.msra.mxu0 0
    %684 = vmatprep.subr.bf16.mxu0 0
    %685 = vmatpush1.bf16.msra.mxu0 0
    %686 = vmatprep.subr.bf16.mxu0 0
    %687 = vmatpush1.bf16.msra.mxu0 0
    %688 = vmatprep.mubr.bf16.mxu0 0
    %689 = vmatmul.mubr.bf16.gmra.mrb[0].mxu0 %v655
    %v690 = vpop.f32.mrb[0].mxu0
    %v691 = vadd.f32 0.0, %v690
    %v692 = vpop.f32.mrb[0].mxu0
    %v693 = vadd.f32 0.0, %v692
    %v694 = vpop.f32.mrb[0].mxu0
    %v695 = vpop.f32.mrb[0].mxu0
    %696 = vdwg.mxu0
    %697 = vmatprep.subr.bf16.mxu0 %v363
    %698 = vmatpush1.bf16.msra.mxu0 %v362
    %699 = vmatprep.subr.bf16.mxu0 %v367
    %700 = vmatpush1.bf16.msra.mxu0 %v366
    %701 = vmatprep.subr.bf16.mxu0 %v371
    %702 = vmatpush1.bf16.msra.mxu0 %v370
    %703 = vmatprep.subr.bf16.mxu0 %v375
    %704 = vmatpush1.bf16.msra.mxu0 %v374
    %705 = vmatprep.subr.bf16.mxu0 %v379
    %706 = vmatpush1.bf16.msra.mxu0 %v378
    %707 = vmatprep.subr.bf16.mxu0 %v383
    %708 = vmatpush1.bf16.msra.mxu0 %v382
    %709 = vmatprep.subr.bf16.mxu0 %v387
    %710 = vmatpush1.bf16.msra.mxu0 %v386
    %711 = vmatprep.subr.bf16.mxu0 %v391
    %712 = vmatpush1.bf16.msra.mxu0 %v390
    %713 = vmatprep.subr.bf16.mxu0 0
    %714 = vmatpush1.bf16.msra.mxu0 0
    %715 = vmatprep.subr.bf16.mxu0 0
    %716 = vmatpush1.bf16.msra.mxu0 0
    %717 = vmatprep.subr.bf16.mxu0 0
    %718 = vmatpush1.bf16.msra.mxu0 0
    %719 = vmatprep.subr.bf16.mxu0 0
    %720 = vmatpush1.bf16.msra.mxu0 0
    %721 = vmatprep.subr.bf16.mxu0 0
    %722 = vmatpush1.bf16.msra.mxu0 0
    %723 = vmatprep.subr.bf16.mxu0 0
    %724 = vmatpush1.bf16.msra.mxu0 0
    %725 = vmatprep.subr.bf16.mxu0 0
    %726 = vmatpush1.bf16.msra.mxu0 0
    %727 = vmatprep.subr.bf16.mxu0 0
    %728 = vmatpush1.bf16.msra.mxu0 0
    %729 = vmatprep.mubr.bf16.mxu0 0
    %730 = vmatmul.mubr.bf16.gmra.mrb[0].mxu0 %v655
    %v731 = vpop.f32.mrb[0].mxu0
    %v732 = vadd.f32 0.0, %v731
    %v733 = vpop.f32.mrb[0].mxu0
    %v734 = vadd.f32 0.0, %v733
    %v735 = vpop.f32.mrb[0].mxu0
    %v736 = vpop.f32.mrb[0].mxu0
    %737 = vdwg.mxu0
    %v738 = vadd.f32 %v651, %v691
    %v739 = vadd.f32 %v652, %v693
    %v740 = vadd.f32 %v653, %v732
    %v741 = vadd.f32 %v654, %v734
    %v742 = vxor.u32 %v738, 2147483648
    %v743 = vmul.f32 %v742, 1.442695
    %v744 = vpow.pop %v743
    %v745 = vadd.f32 %v744, 1.0
    %v746 = vrcp.pop %v745
    %v747 = vmul.f32 1.0, %v746
    %v748 = vxor.u32 %v739, 2147483648
    %v749 = vmul.f32 %v748, 1.442695
    %v750 = vpow.pop %v749
    %v751 = vadd.f32 %v750, 1.0
    %v752 = vrcp.pop %v751
    %v753 = vmul.f32 1.0, %v752
    %v754 = vtanh.pop %v740
    %v755 = vxor.u32 %v741, 2147483648
    %v756 = vmul.f32 %v755, 1.442695
    %v757 = vpow.pop %v756
    %v758 = vadd.f32 %v757, 1.0
    %v759 = vrcp.pop %v758
    %v760 = vmul.f32 1.0, %v759
    %v761 = vmul.f32 %v753, %v647
    %v762 = vmul.f32 %v747, %v754
    %v763 = vadd.f32 %v761, %v762
    %v764 = vtanh.pop %v763
    %v765 = vmul.f32 %v760, %v764
    %s766 = scalar_lea.vmem [#allocation2], 96
    %v767 = vld [vmem:[%s766] sm:$0xff]
    %v768 = vld [vmem:[%s766 + $0x8] sm:$0xff]
    %v769 = vld [vmem:[%s766 + $0x10] sm:$0xff]
    %v770 = vld [vmem:[%s766 + $0x18] sm:$0xff]
    %v771 = vpack.c.bf16 %v765, %v765
    %772 = vmatprep.subr.bf16.mxu0 %v361
    %773 = vmatpush1.bf16.msra.mxu0 %v360
    %774 = vmatprep.subr.bf16.mxu0 %v365
    %775 = vmatpush1.bf16.msra.mxu0 %v364
    %776 = vmatprep.subr.bf16.mxu0 %v369
    %777 = vmatpush1.bf16.msra.mxu0 %v368
    %778 = vmatprep.subr.bf16.mxu0 %v373
    %779 = vmatpush1.bf16.msra.mxu0 %v372
    %780 = vmatprep.subr.bf16.mxu0 %v377
    %781 = vmatpush1.bf16.msra.mxu0 %v376
    %782 = vmatprep.subr.bf16.mxu0 %v381
    %783 = vmatpush1.bf16.msra.mxu0 %v380
    %784 = vmatprep.subr.bf16.mxu0 %v385
    %785 = vmatpush1.bf16.msra.mxu0 %v384
    %786 = vmatprep.subr.bf16.mxu0 %v389
    %787 = vmatpush1.bf16.msra.mxu0 %v388
    %788 = vmatprep.subr.bf16.mxu0 0
    %789 = vmatpush1.bf16.msra.mxu0 0
    %790 = vmatprep.subr.bf16.mxu0 0
    %791 = vmatpush1.bf16.msra.mxu0 0
    %792 = vmatprep.subr.bf16.mxu0 0
    %793 = vmatpush1.bf16.msra.mxu0 0
    %794 = vmatprep.subr.bf16.mxu0 0
    %795 = vmatpush1.bf16.msra.mxu0 0
    %796 = vmatprep.subr.bf16.mxu0 0
    %797 = vmatpush1.bf16.msra.mxu0 0
    %798 = vmatprep.subr.bf16.mxu0 0
    %799 = vmatpush1.bf16.msra.mxu0 0
    %800 = vmatprep.subr.bf16.mxu0 0
    %801 = vmatpush1.bf16.msra.mxu0 0
    %802 = vmatprep.subr.bf16.mxu0 0
    %803 = vmatpush1.bf16.msra.mxu0 0
    %804 = vmatprep.mubr.bf16.mxu0 0
    %805 = vmatmul.mubr.bf16.gmra.mrb[0].mxu0 %v771
    %v806 = vpop.f32.mrb[0].mxu0
    %v807 = vadd.f32 0.0, %v806
    %v808 = vpop.f32.mrb[0].mxu0
    %v809 = vadd.f32 0.0, %v808
    %v810 = vpop.f32.mrb[0].mxu0
    %v811 = vpop.f32.mrb[0].mxu0
    %812 = vdwg.mxu0
    %813 = vmatprep.subr.bf16.mxu0 %v363
    %814 = vmatpush1.bf16.msra.mxu0 %v362
    %815 = vmatprep.subr.bf16.mxu0 %v367
    %816 = vmatpush1.bf16.msra.mxu0 %v366
    %817 = vmatprep.subr.bf16.mxu0 %v371
    %818 = vmatpush1.bf16.msra.mxu0 %v370
    %819 = vmatprep.subr.bf16.mxu0 %v375
    %820 = vmatpush1.bf16.msra.mxu0 %v374
    %821 = vmatprep.subr.bf16.mxu0 %v379
    %822 = vmatpush1.bf16.msra.mxu0 %v378
    %823 = vmatprep.subr.bf16.mxu0 %v383
    %824 = vmatpush1.bf16.msra.mxu0 %v382
    %825 = vmatprep.subr.bf16.mxu0 %v387
    %826 = vmatpush1.bf16.msra.mxu0 %v386
    %827 = vmatprep.subr.bf16.mxu0 %v391
    %828 = vmatpush1.bf16.msra.mxu0 %v390
    %829 = vmatprep.subr.bf16.mxu0 0
    %830 = vmatpush1.bf16.msra.mxu0 0
    %831 = vmatprep.subr.bf16.mxu0 0
    %832 = vmatpush1.bf16.msra.mxu0 0
    %833 = vmatprep.subr.bf16.mxu0 0
    %834 = vmatpush1.bf16.msra.mxu0 0
    %835 = vmatprep.subr.bf16.mxu0 0
    %836 = vmatpush1.bf16.msra.mxu0 0
    %837 = vmatprep.subr.bf16.mxu0 0
    %838 = vmatpush1.bf16.msra.mxu0 0
    %839 = vmatprep.subr.bf16.mxu0 0
    %840 = vmatpush1.bf16.msra.mxu0 0
    %841 = vmatprep.subr.bf16.mxu0 0
    %842 = vmatpush1.bf16.msra.mxu0 0
    %843 = vmatprep.subr.bf16.mxu0 0
    %844 = vmatpush1.bf16.msra.mxu0 0
    %845 = vmatprep.mubr.bf16.mxu0 0
    %846 = vmatmul.mubr.bf16.gmra.mrb[0].mxu0 %v771
    %v847 = vpop.f32.mrb[0].mxu0
    %v848 = vadd.f32 0.0, %v847
    %v849 = vpop.f32.mrb[0].mxu0
    %v850 = vadd.f32 0.0, %v849
    %v851 = vpop.f32.mrb[0].mxu0
    %v852 = vpop.f32.mrb[0].mxu0
    %853 = vdwg.mxu0
    %v854 = vadd.f32 %v767, %v807
    %v855 = vadd.f32 %v768, %v809
    %v856 = vadd.f32 %v769, %v848
    %v857 = vadd.f32 %v770, %v850
    %v858 = vxor.u32 %v854, 2147483648
    %v859 = vmul.f32 %v858, 1.442695
    %v860 = vpow.pop %v859
    %v861 = vadd.f32 %v860, 1.0
    %v862 = vrcp.pop %v861
    %v863 = vmul.f32 1.0, %v862
    %v864 = vxor.u32 %v855, 2147483648
    %v865 = vmul.f32 %v864, 1.442695
    %v866 = vpow.pop %v865
    %v867 = vadd.f32 %v866, 1.0
    %v868 = vrcp.pop %v867
    %v869 = vmul.f32 1.0, %v868
    %v870 = vtanh.pop %v856
    %v871 = vxor.u32 %v857, 2147483648
    %v872 = vmul.f32 %v871, 1.442695
    %v873 = vpow.pop %v872
    %v874 = vadd.f32 %v873, 1.0
    %v875 = vrcp.pop %v874
    %v876 = vmul.f32 1.0, %v875
    %v877 = vmul.f32 %v869, %v763
    %v878 = vmul.f32 %v863, %v870
    %v879 = vadd.f32 %v877, %v878
    %v880 = vtanh.pop %v879
    %v881 = vmul.f32 %v876, %v880
    %s882 = scalar_lea.vmem [#allocation2], 128
    %v883 = vld [vmem:[%s882] sm:$0xff]
    %v884 = vld [vmem:[%s882 + $0x8] sm:$0xff]
    %v885 = vld [vmem:[%s882 + $0x10] sm:$0xff]
    %v886 = vld [vmem:[%s882 + $0x18] sm:$0xff]
    %v887 = vpack.c.bf16 %v881, %v881
    %888 = vmatprep.subr.bf16.mxu0 %v361
    %889 = vmatpush1.bf16.msra.mxu0 %v360
    %890 = vmatprep.subr.bf16.mxu0 %v365
    %891 = vmatpush1.bf16.msra.mxu0 %v364
    %892 = vmatprep.subr.bf16.mxu0 %v369
    %893 = vmatpush1.bf16.msra.mxu0 %v368
    %894 = vmatprep.subr.bf16.mxu0 %v373
    %895 = vmatpush1.bf16.msra.mxu0 %v372
    %896 = vmatprep.subr.bf16.mxu0 %v377
    %897 = vmatpush1.bf16.msra.mxu0 %v376
    %898 = vmatprep.subr.bf16.mxu0 %v381
    %899 = vmatpush1.bf16.msra.mxu0 %v380
    %900 = vmatprep.subr.bf16.mxu0 %v385
    %901 = vmatpush1.bf16.msra.mxu0 %v384
    %902 = vmatprep.subr.bf16.mxu0 %v389
    %903 = vmatpush1.bf16.msra.mxu0 %v388
    %904 = vmatprep.subr.bf16.mxu0 0
    %905 = vmatpush1.bf16.msra.mxu0 0
    %906 = vmatprep.subr.bf16.mxu0 0
    %907 = vmatpush1.bf16.msra.mxu0 0
    %908 = vmatprep.subr.bf16.mxu0 0
    %909 = vmatpush1.bf16.msra.mxu0 0
    %910 = vmatprep.subr.bf16.mxu0 0
    %911 = vmatpush1.bf16.msra.mxu0 0
    %912 = vmatprep.subr.bf16.mxu0 0
    %913 = vmatpush1.bf16.msra.mxu0 0
    %914 = vmatprep.subr.bf16.mxu0 0
    %915 = vmatpush1.bf16.msra.mxu0 0
    %916 = vmatprep.subr.bf16.mxu0 0
    %917 = vmatpush1.bf16.msra.mxu0 0
    %918 = vmatprep.subr.bf16.mxu0 0
    %919 = vmatpush1.bf16.msra.mxu0 0
    %920 = vmatprep.mubr.bf16.mxu0 0
    %921 = vmatmul.mubr.bf16.gmra.mrb[0].mxu0 %v887
    %v922 = vpop.f32.mrb[0].mxu0
    %v923 = vadd.f32 0.0, %v922
    %v924 = vpop.f32.mrb[0].mxu0
    %v925 = vadd.f32 0.0, %v924
    %v926 = vpop.f32.mrb[0].mxu0
    %v927 = vpop.f32.mrb[0].mxu0
    %928 = vdwg.mxu0
    %929 = vmatprep.subr.bf16.mxu0 %v363
    %930 = vmatpush1.bf16.msra.mxu0 %v362
    %931 = vmatprep.subr.bf16.mxu0 %v367
    %932 = vmatpush1.bf16.msra.mxu0 %v366
    %933 = vmatprep.subr.bf16.mxu0 %v371
    %934 = vmatpush1.bf16.msra.mxu0 %v370
    %935 = vmatprep.subr.bf16.mxu0 %v375
    %936 = vmatpush1.bf16.msra.mxu0 %v374
    %937 = vmatprep.subr.bf16.mxu0 %v379
    %938 = vmatpush1.bf16.msra.mxu0 %v378
    %939 = vmatprep.subr.bf16.mxu0 %v383
    %940 = vmatpush1.bf16.msra.mxu0 %v382
    %941 = vmatprep.subr.bf16.mxu0 %v387
    %942 = vmatpush1.bf16.msra.mxu0 %v386
    %943 = vmatprep.subr.bf16.mxu0 %v391
    %944 = vmatpush1.bf16.msra.mxu0 %v390
    %945 = vmatprep.subr.bf16.mxu0 0
    %946 = vmatpush1.bf16.msra.mxu0 0
    %947 = vmatprep.subr.bf16.mxu0 0
    %948 = vmatpush1.bf16.msra.mxu0 0
    %949 = vmatprep.subr.bf16.mxu0 0
    %950 = vmatpush1.bf16.msra.mxu0 0
    %951 = vmatprep.subr.bf16.mxu0 0
    %952 = vmatpush1.bf16.msra.mxu0 0
    %953 = vmatprep.subr.bf16.mxu0 0
    %954 = vmatpush1.bf16.msra.mxu0 0
    %955 = vmatprep.subr.bf16.mxu0 0
    %956 = vmatpush1.bf16.msra.mxu0 0
    %957 = vmatprep.subr.bf16.mxu0 0
    %958 = vmatpush1.bf16.msra.mxu0 0
    %959 = vmatprep.subr.bf16.mxu0 0
    %960 = vmatpush1.bf16.msra.mxu0 0
    %961 = vmatprep.mubr.bf16.mxu0 0
    %962 = vmatmul.mubr.bf16.gmra.mrb[0].mxu0 %v887
    %v963 = vpop.f32.mrb[0].mxu0
    %v964 = vadd.f32 0.0, %v963
    %v965 = vpop.f32.mrb[0].mxu0
    %v966 = vadd.f32 0.0, %v965
    %v967 = vpop.f32.mrb[0].mxu0
    %v968 = vpop.f32.mrb[0].mxu0
    %969 = vdwg.mxu0
    %v970 = vadd.f32 %v883, %v923
    %v971 = vadd.f32 %v884, %v925
    %v972 = vadd.f32 %v885, %v964
    %v973 = vadd.f32 %v886, %v966
    %v974 = vxor.u32 %v970, 2147483648
    %v975 = vmul.f32 %v974, 1.442695
    %v976 = vpow.pop %v975
    %v977 = vadd.f32 %v976, 1.0
    %v978 = vrcp.pop %v977
    %v979 = vmul.f32 1.0, %v978
    %v980 = vxor.u32 %v971, 2147483648
    %v981 = vmul.f32 %v980, 1.442695
    %v982 = vpow.pop %v981
    %v983 = vadd.f32 %v982, 1.0
    %v984 = vrcp.pop %v983
    %v985 = vmul.f32 1.0, %v984
    %v986 = vtanh.pop %v972
    %v987 = vxor.u32 %v973, 2147483648
    %v988 = vmul.f32 %v987, 1.442695
    %v989 = vpow.pop %v988
    %v990 = vadd.f32 %v989, 1.0
    %v991 = vrcp.pop %v990
    %v992 = vmul.f32 1.0, %v991
    %v993 = vmul.f32 %v985, %v879
    %v994 = vmul.f32 %v979, %v986
    %v995 = vadd.f32 %v993, %v994
    %v996 = vtanh.pop %v995
    %v997 = vmul.f32 %v992, %v996
    %s998 = scalar_lea.vmem [#allocation2], 160
    %v999 = vld [vmem:[%s998] sm:$0xff]
    %v1000 = vld [vmem:[%s998 + $0x8] sm:$0xff]
    %v1001 = vld [vmem:[%s998 + $0x10] sm:$0xff]
    %v1002 = vld [vmem:[%s998 + $0x18] sm:$0xff]
    %v1003 = vpack.c.bf16 %v997, %v997
    %1004 = vmatprep.subr.bf16.mxu0 %v361
    %1005 = vmatpush1.bf16.msra.mxu0 %v360
    %1006 = vmatprep.subr.bf16.mxu0 %v365
    %1007 = vmatpush1.bf16.msra.mxu0 %v364
    %1008 = vmatprep.subr.bf16.mxu0 %v369
    %1009 = vmatpush1.bf16.msra.mxu0 %v368
    %1010 = vmatprep.subr.bf16.mxu0 %v373
    %1011 = vmatpush1.bf16.msra.mxu0 %v372
    %1012 = vmatprep.subr.bf16.mxu0 %v377
    %1013 = vmatpush1.bf16.msra.mxu0 %v376
    %1014 = vmatprep.subr.bf16.mxu0 %v381
    %1015 = vmatpush1.bf16.msra.mxu0 %v380
    %1016 = vmatprep.subr.bf16.mxu0 %v385
    %1017 = vmatpush1.bf16.msra.mxu0 %v384
    %1018 = vmatprep.subr.bf16.mxu0 %v389
    %1019 = vmatpush1.bf16.msra.mxu0 %v388
    %1020 = vmatprep.subr.bf16.mxu0 0
    %1021 = vmatpush1.bf16.msra.mxu0 0
    %1022 = vmatprep.subr.bf16.mxu0 0
    %1023 = vmatpush1.bf16.msra.mxu0 0
    %1024 = vmatprep.subr.bf16.mxu0 0
    %1025 = vmatpush1.bf16.msra.mxu0 0
    %1026 = vmatprep.subr.bf16.mxu0 0
    %1027 = vmatpush1.bf16.msra.mxu0 0
    %1028 = vmatprep.subr.bf16.mxu0 0
    %1029 = vmatpush1.bf16.msra.mxu0 0
    %1030 = vmatprep.subr.bf16.mxu0 0
    %1031 = vmatpush1.bf16.msra.mxu0 0
    %1032 = vmatprep.subr.bf16.mxu0 0
    %1033 = vmatpush1.bf16.msra.mxu0 0
    %1034 = vmatprep.subr.bf16.mxu0 0
    %1035 = vmatpush1.bf16.msra.mxu0 0
    %1036 = vmatprep.mubr.bf16.mxu0 0
    %1037 = vmatmul.mubr.bf16.gmra.mrb[0].mxu0 %v1003
    %v1038 = vpop.f32.mrb[0].mxu0
    %v1039 = vadd.f32 0.0, %v1038
    %v1040 = vpop.f32.mrb[0].mxu0
    %v1041 = vadd.f32 0.0, %v1040
    %v1042 = vpop.f32.mrb[0].mxu0
    %v1043 = vpop.f32.mrb[0].mxu0
    %1044 = vdwg.mxu0
    %1045 = vmatprep.subr.bf16.mxu0 %v363
    %1046 = vmatpush1.bf16.msra.mxu0 %v362
    %1047 = vmatprep.subr.bf16.mxu0 %v367
    %1048 = vmatpush1.bf16.msra.mxu0 %v366
    %1049 = vmatprep.subr.bf16.mxu0 %v371
    %1050 = vmatpush1.bf16.msra.mxu0 %v370
    %1051 = vmatprep.subr.bf16.mxu0 %v375
    %1052 = vmatpush1.bf16.msra.mxu0 %v374
    %1053 = vmatprep.subr.bf16.mxu0 %v379
    %1054 = vmatpush1.bf16.msra.mxu0 %v378
    %1055 = vmatprep.subr.bf16.mxu0 %v383
    %1056 = vmatpush1.bf16.msra.mxu0 %v382
    %1057 = vmatprep.subr.bf16.mxu0 %v387
    %1058 = vmatpush1.bf16.msra.mxu0 %v386
    %1059 = vmatprep.subr.bf16.mxu0 %v391
    %1060 = vmatpush1.bf16.msra.mxu0 %v390
    %1061 = vmatprep.subr.bf16.mxu0 0
    %1062 = vmatpush1.bf16.msra.mxu0 0
    %1063 = vmatprep.subr.bf16.mxu0 0
    %1064 = vmatpush1.bf16.msra.mxu0 0
    %1065 = vmatprep.subr.bf16.mxu0 0
    %1066 = vmatpush1.bf16.msra.mxu0 0
    %1067 = vmatprep.subr.bf16.mxu0 0
    %1068 = vmatpush1.bf16.msra.mxu0 0
    %1069 = vmatprep.subr.bf16.mxu0 0
    %1070 = vmatpush1.bf16.msra.mxu0 0
    %1071 = vmatprep.subr.bf16.mxu0 0
    %1072 = vmatpush1.bf16.msra.mxu0 0
    %1073 = vmatprep.subr.bf16.mxu0 0
    %1074 = vmatpush1.bf16.msra.mxu0 0
    %1075 = vmatprep.subr.bf16.mxu0 0
    %1076 = vmatpush1.bf16.msra.mxu0 0
    %1077 = vmatprep.mubr.bf16.mxu0 0
    %1078 = vmatmul.mubr.bf16.gmra.mrb[0].mxu0 %v1003
    %v1079 = vpop.f32.mrb[0].mxu0
    %v1080 = vadd.f32 0.0, %v1079
    %v1081 = vpop.f32.mrb[0].mxu0
    %v1082 = vadd.f32 0.0, %v1081
    %v1083 = vpop.f32.mrb[0].mxu0
    %v1084 = vpop.f32.mrb[0].mxu0
    %1085 = vdwg.mxu0
    %v1086 = vadd.f32 %v999, %v1039
    %v1087 = vadd.f32 %v1000, %v1041
    %v1088 = vadd.f32 %v1001, %v1080
    %v1089 = vadd.f32 %v1002, %v1082
    %v1090 = vxor.u32 %v1086, 2147483648
    %v1091 = vmul.f32 %v1090, 1.442695
    %v1092 = vpow.pop %v1091
    %v1093 = vadd.f32 %v1092, 1.0
    %v1094 = vrcp.pop %v1093
    %v1095 = vmul.f32 1.0, %v1094
    %v1096 = vxor.u32 %v1087, 2147483648
    %v1097 = vmul.f32 %v1096, 1.442695
    %v1098 = vpow.pop %v1097
    %v1099 = vadd.f32 %v1098, 1.0
    %v1100 = vrcp.pop %v1099
    %v1101 = vmul.f32 1.0, %v1100
    %v1102 = vtanh.pop %v1088
    %v1103 = vxor.u32 %v1089, 2147483648
    %v1104 = vmul.f32 %v1103, 1.442695
    %v1105 = vpow.pop %v1104
    %v1106 = vadd.f32 %v1105, 1.0
    %v1107 = vrcp.pop %v1106
    %v1108 = vmul.f32 1.0, %v1107
    %v1109 = vmul.f32 %v1101, %v995
    %v1110 = vmul.f32 %v1095, %v1102
    %v1111 = vadd.f32 %v1109, %v1110
    %v1112 = vtanh.pop %v1111
    %v1113 = vmul.f32 %v1108, %v1112
    %s1114 = scalar_lea.vmem [#allocation2], 192
    %v1115 = vld [vmem:[%s1114] sm:$0xff]
    %v1116 = vld [vmem:[%s1114 + $0x8] sm:$0xff]
    %v1117 = vld [vmem:[%s1114 + $0x10] sm:$0xff]
    %v1118 = vld [vmem:[%s1114 + $0x18] sm:$0xff]
    %v1119 = vpack.c.bf16 %v1113, %v1113
    %1120 = vmatprep.subr.bf16.mxu0 %v361
    %1121 = vmatpush1.bf16.msra.mxu0 %v360
    %1122 = vmatprep.subr.bf16.mxu0 %v365
    %1123 = vmatpush1.bf16.msra.mxu0 %v364
    %1124 = vmatprep.subr.bf16.mxu0 %v369
    %1125 = vmatpush1.bf16.msra.mxu0 %v368
    %1126 = vmatprep.subr.bf16.mxu0 %v373
    %1127 = vmatpush1.bf16.msra.mxu0 %v372
    %1128 = vmatprep.subr.bf16.mxu0 %v377
    %1129 = vmatpush1.bf16.msra.mxu0 %v376
    %1130 = vmatprep.subr.bf16.mxu0 %v381
    %1131 = vmatpush1.bf16.msra.mxu0 %v380
    %1132 = vmatprep.subr.bf16.mxu0 %v385
    %1133 = vmatpush1.bf16.msra.mxu0 %v384
    %1134 = vmatprep.subr.bf16.mxu0 %v389
    %1135 = vmatpush1.bf16.msra.mxu0 %v388
    %1136 = vmatprep.subr.bf16.mxu0 0
    %1137 = vmatpush1.bf16.msra.mxu0 0
    %1138 = vmatprep.subr.bf16.mxu0 0
    %1139 = vmatpush1.bf16.msra.mxu0 0
    %1140 = vmatprep.subr.bf16.mxu0 0
    %1141 = vmatpush1.bf16.msra.mxu0 0
    %1142 = vmatprep.subr.bf16.mxu0 0
    %1143 = vmatpush1.bf16.msra.mxu0 0
    %1144 = vmatprep.subr.bf16.mxu0 0
    %1145 = vmatpush1.bf16.msra.mxu0 0
    %1146 = vmatprep.subr.bf16.mxu0 0
    %1147 = vmatpush1.bf16.msra.mxu0 0
    %1148 = vmatprep.subr.bf16.mxu0 0
    %1149 = vmatpush1.bf16.msra.mxu0 0
    %1150 = vmatprep.subr.bf16.mxu0 0
    %1151 = vmatpush1.bf16.msra.mxu0 0
    %1152 = vmatprep.mubr.bf16.mxu0 0
    %1153 = vmatmul.mubr.bf16.gmra.mrb[0].mxu0 %v1119
    %v1154 = vpop.f32.mrb[0].mxu0
    %v1155 = vadd.f32 0.0, %v1154
    %v1156 = vpop.f32.mrb[0].mxu0
    %v1157 = vadd.f32 0.0, %v1156
    %v1158 = vpop.f32.mrb[0].mxu0
    %v1159 = vpop.f32.mrb[0].mxu0
    %1160 = vdwg.mxu0
    %1161 = vmatprep.subr.bf16.mxu0 %v363
    %1162 = vmatpush1.bf16.msra.mxu0 %v362
    %1163 = vmatprep.subr.bf16.mxu0 %v367
    %1164 = vmatpush1.bf16.msra.mxu0 %v366
    %1165 = vmatprep.subr.bf16.mxu0 %v371
    %1166 = vmatpush1.bf16.msra.mxu0 %v370
    %1167 = vmatprep.subr.bf16.mxu0 %v375
    %1168 = vmatpush1.bf16.msra.mxu0 %v374
    %1169 = vmatprep.subr.bf16.mxu0 %v379
    %1170 = vmatpush1.bf16.msra.mxu0 %v378
    %1171 = vmatprep.subr.bf16.mxu0 %v383
    %1172 = vmatpush1.bf16.msra.mxu0 %v382
    %1173 = vmatprep.subr.bf16.mxu0 %v387
    %1174 = vmatpush1.bf16.msra.mxu0 %v386
    %1175 = vmatprep.subr.bf16.mxu0 %v391
    %1176 = vmatpush1.bf16.msra.mxu0 %v390
    %1177 = vmatprep.subr.bf16.mxu0 0
    %1178 = vmatpush1.bf16.msra.mxu0 0
    %1179 = vmatprep.subr.bf16.mxu0 0
    %1180 = vmatpush1.bf16.msra.mxu0 0
    %1181 = vmatprep.subr.bf16.mxu0 0
    %1182 = vmatpush1.bf16.msra.mxu0 0
    %1183 = vmatprep.subr.bf16.mxu0 0
    %1184 = vmatpush1.bf16.msra.mxu0 0
    %1185 = vmatprep.subr.bf16.mxu0 0
    %1186 = vmatpush1.bf16.msra.mxu0 0
    %1187 = vmatprep.subr.bf16.mxu0 0
    %1188 = vmatpush1.bf16.msra.mxu0 0
    %1189 = vmatprep.subr.bf16.mxu0 0
    %1190 = vmatpush1.bf16.msra.mxu0 0
    %1191 = vmatprep.subr.bf16.mxu0 0
    %1192 = vmatpush1.bf16.msra.mxu0 0
    %1193 = vmatprep.mubr.bf16.mxu0 0
    %1194 = vmatmul.mubr.bf16.gmra.mrb[0].mxu0 %v1119
    %v1195 = vpop.f32.mrb[0].mxu0
    %v1196 = vadd.f32 0.0, %v1195
    %v1197 = vpop.f32.mrb[0].mxu0
    %v1198 = vadd.f32 0.0, %v1197
    %v1199 = vpop.f32.mrb[0].mxu0
    %v1200 = vpop.f32.mrb[0].mxu0
    %1201 = vdwg.mxu0
    %v1202 = vadd.f32 %v1115, %v1155
    %v1203 = vadd.f32 %v1116, %v1157
    %v1204 = vadd.f32 %v1117, %v1196
    %v1205 = vadd.f32 %v1118, %v1198
    %v1206 = vxor.u32 %v1202, 2147483648
    %v1207 = vmul.f32 %v1206, 1.442695
    %v1208 = vpow.pop %v1207
    %v1209 = vadd.f32 %v1208, 1.0
    %v1210 = vrcp.pop %v1209
    %v1211 = vmul.f32 1.0, %v1210
    %v1212 = vxor.u32 %v1203, 2147483648
    %v1213 = vmul.f32 %v1212, 1.442695
    %v1214 = vpow.pop %v1213
    %v1215 = vadd.f32 %v1214, 1.0
    %v1216 = vrcp.pop %v1215
    %v1217 = vmul.f32 1.0, %v1216
    %v1218 = vtanh.pop %v1204
    %v1219 = vxor.u32 %v1205, 2147483648
    %v1220 = vmul.f32 %v1219, 1.442695
    %v1221 = vpow.pop %v1220
    %v1222 = vadd.f32 %v1221, 1.0
    %v1223 = vrcp.pop %v1222
    %v1224 = vmul.f32 1.0, %v1223
    %v1225 = vmul.f32 %v1217, %v1111
    %v1226 = vmul.f32 %v1211, %v1218
    %v1227 = vadd.f32 %v1225, %v1226
    %v1228 = vtanh.pop %v1227
    %v1229 = vmul.f32 %v1224, %v1228
    %s1230 = scalar_lea.vmem [#allocation2], 224
    %v1231 = vld [vmem:[%s1230] sm:$0xff]
    %v1232 = vld [vmem:[%s1230 + $0x8] sm:$0xff]
    %v1233 = vld [vmem:[%s1230 + $0x10] sm:$0xff]
    %v1234 = vld [vmem:[%s1230 + $0x18] sm:$0xff]
    %v1235 = vpack.c.bf16 %v1229, %v1229
    %1236 = vmatprep.subr.bf16.mxu0 %v361
    %1237 = vmatpush1.bf16.msra.mxu0 %v360
    %1238 = vmatprep.subr.bf16.mxu0 %v365
    %1239 = vmatpush1.bf16.msra.mxu0 %v364
    %1240 = vmatprep.subr.bf16.mxu0 %v369
    %1241 = vmatpush1.bf16.msra.mxu0 %v368
    %1242 = vmatprep.subr.bf16.mxu0 %v373
    %1243 = vmatpush1.bf16.msra.mxu0 %v372
    %1244 = vmatprep.subr.bf16.mxu0 %v377
    %1245 = vmatpush1.bf16.msra.mxu0 %v376
    %1246 = vmatprep.subr.bf16.mxu0 %v381
    %1247 = vmatpush1.bf16.msra.mxu0 %v380
    %1248 = vmatprep.subr.bf16.mxu0 %v385
    %1249 = vmatpush1.bf16.msra.mxu0 %v384
    %1250 = vmatprep.subr.bf16.mxu0 %v389
    %1251 = vmatpush1.bf16.msra.mxu0 %v388
    %1252 = vmatprep.subr.bf16.mxu0 0
    %1253 = vmatpush1.bf16.msra.mxu0 0
    %1254 = vmatprep.subr.bf16.mxu0 0
    %1255 = vmatpush1.bf16.msra.mxu0 0
    %1256 = vmatprep.subr.bf16.mxu0 0
    %1257 = vmatpush1.bf16.msra.mxu0 0
    %1258 = vmatprep.subr.bf16.mxu0 0
    %1259 = vmatpush1.bf16.msra.mxu0 0
    %1260 = vmatprep.subr.bf16.mxu0 0
    %1261 = vmatpush1.bf16.msra.mxu0 0
    %1262 = vmatprep.subr.bf16.mxu0 0
    %1263 = vmatpush1.bf16.msra.mxu0 0
    %1264 = vmatprep.subr.bf16.mxu0 0
    %1265 = vmatpush1.bf16.msra.mxu0 0
    %1266 = vmatprep.subr.bf16.mxu0 0
    %1267 = vmatpush1.bf16.msra.mxu0 0
    %1268 = vmatprep.mubr.bf16.mxu0 0
    %1269 = vmatmul.mubr.bf16.gmra.mrb[0].mxu0 %v1235
    %v1270 = vpop.f32.mrb[0].mxu0
    %v1271 = vadd.f32 0.0, %v1270
    %v1272 = vpop.f32.mrb[0].mxu0
    %v1273 = vadd.f32 0.0, %v1272
    %v1274 = vpop.f32.mrb[0].mxu0
    %v1275 = vpop.f32.mrb[0].mxu0
    %1276 = vdwg.mxu0
    %1277 = vmatprep.subr.bf16.mxu0 %v363
    %1278 = vmatpush1.bf16.msra.mxu0 %v362
    %1279 = vmatprep.subr.bf16.mxu0 %v367
    %1280 = vmatpush1.bf16.msra.mxu0 %v366
    %1281 = vmatprep.subr.bf16.mxu0 %v371
    %1282 = vmatpush1.bf16.msra.mxu0 %v370
    %1283 = vmatprep.subr.bf16.mxu0 %v375
    %1284 = vmatpush1.bf16.msra.mxu0 %v374
    %1285 = vmatprep.subr.bf16.mxu0 %v379
    %1286 = vmatpush1.bf16.msra.mxu0 %v378
    %1287 = vmatprep.subr.bf16.mxu0 %v383
    %1288 = vmatpush1.bf16.msra.mxu0 %v382
    %1289 = vmatprep.subr.bf16.mxu0 %v387
    %1290 = vmatpush1.bf16.msra.mxu0 %v386
    %1291 = vmatprep.subr.bf16.mxu0 %v391
    %1292 = vmatpush1.bf16.msra.mxu0 %v390
    %1293 = vmatprep.subr.bf16.mxu0 0
    %1294 = vmatpush1.bf16.msra.mxu0 0
    %1295 = vmatprep.subr.bf16.mxu0 0
    %1296 = vmatpush1.bf16.msra.mxu0 0
    %1297 = vmatprep.subr.bf16.mxu0 0
    %1298 = vmatpush1.bf16.msra.mxu0 0
    %1299 = vmatprep.subr.bf16.mxu0 0
    %1300 = vmatpush1.bf16.msra.mxu0 0
    %1301 = vmatprep.subr.bf16.mxu0 0
    %1302 = vmatpush1.bf16.msra.mxu0 0
    %1303 = vmatprep.subr.bf16.mxu0 0
    %1304 = vmatpush1.bf16.msra.mxu0 0
    %1305 = vmatprep.subr.bf16.mxu0 0
    %1306 = vmatpush1.bf16.msra.mxu0 0
    %1307 = vmatprep.subr.bf16.mxu0 0
    %1308 = vmatpush1.bf16.msra.mxu0 0
    %1309 = vmatprep.mubr.bf16.mxu0 0
    %1310 = vmatmul.mubr.bf16.gmra.mrb[0].mxu0 %v1235
    %v1311 = vpop.f32.mrb[0].mxu0
    %v1312 = vadd.f32 0.0, %v1311
    %v1313 = vpop.f32.mrb[0].mxu0
    %v1314 = vadd.f32 0.0, %v1313
    %v1315 = vpop.f32.mrb[0].mxu0
    %v1316 = vpop.f32.mrb[0].mxu0
    %1317 = vdwg.mxu0
    %v1318 = vadd.f32 %v1231, %v1271
    %v1319 = vadd.f32 %v1232, %v1273
    %v1320 = vadd.f32 %v1233, %v1312
    %v1321 = vadd.f32 %v1234, %v1314
    %v1322 = vxor.u32 %v1318, 2147483648
    %v1323 = vmul.f32 %v1322, 1.442695
    %v1324 = vpow.pop %v1323
    %v1325 = vadd.f32 %v1324, 1.0
    %v1326 = vrcp.pop %v1325
    %v1327 = vmul.f32 1.0, %v1326
    %v1328 = vxor.u32 %v1319, 2147483648
    %v1329 = vmul.f32 %v1328, 1.442695
    %v1330 = vpow.pop %v1329
    %v1331 = vadd.f32 %v1330, 1.0
    %v1332 = vrcp.pop %v1331
    %v1333 = vmul.f32 1.0, %v1332
    %v1334 = vtanh.pop %v1320
    %v1335 = vxor.u32 %v1321, 2147483648
    %v1336 = vmul.f32 %v1335, 1.442695
    %v1337 = vpow.pop %v1336
    %v1338 = vadd.f32 %v1337, 1.0
    %v1339 = vrcp.pop %v1338
    %v1340 = vmul.f32 1.0, %v1339
    %v1341 = vmul.f32 %v1333, %v1227
    %v1342 = vmul.f32 %v1327, %v1334
    %v1343 = vadd.f32 %v1341, %v1342
    %v1344 = vtanh.pop %v1343
    %v1345 = vmul.f32 %v1340, %v1344
    %v1346 = vld [vmem:[%s4] sm:$0x1]
    %v1348 = vlaneseq
    %v1349 = vshrl.u32 %v1348, 7
    %v1350 = vsub.s32 0, %v1349
    %v1351 = vrot.slane %v1346, %v1350
    %v1353 = vmul.f32 %v1345, %v1351
    %1354 = vadd.xlane.f32.xlu0 %v1353
    %v1355 = vpop.xlane.xlu0 %1354
    %v1356 = vld [vmem:[#allocation3] sm:$0x1]
    %v1358 = vlaneseq
    %v1359 = vshrl.u32 %v1358, 7
    %v1360 = vsub.s32 0, %v1359
    %v1361 = vrot.slane %v1356, %v1360
    %v1363 = vadd.f32 %v1355, %v1361
    %vm1364 = vcmask 7168
    %1365 = vst.msk [vmem:[%s6] sm:$0xff] %vm1364, %v1363
    // Predicated region
    $region30: #{tpu_custom_call.1} parent=1 // pred_check
      _
    $region31: #{tpu_custom_call.1} parent=1 // pred_check_branch
      %1367 = sbr.rel (0) target = $region33
    $region32: #{tpu_custom_call.1} parent=1 // pred_region
      _
    $region33: #{tpu_custom_call.1} parent=1 // pred_fallthru
      _
    // Predicated region
    $region34: #{tpu_custom_call.1} parent=1 // pred_check
      _
    $region35: #{tpu_custom_call.1} parent=1 // pred_check_branch
      %1369 = sbr.rel (0) target = $region37
    $region36: #{tpu_custom_call.1} parent=1 // pred_region
      _
    $region37: #{tpu_custom_call.1} parent=1 // pred_fallthru
      _
    %1370 = vsyncpa [#allocation5], 1

</llo_original>
